<compile_context>
chip_gen: v7x
topology: tpu7x:2x2x1
jax: 0.10.0
libtpu: 0.0.40
codegen_flags: <defaults>
</compile_context>

<pallas_src>
import jax
import jax.numpy as jnp
from jax.experimental import pallas as pl
from jax.experimental.pallas import tpu as pltpu


# ---------------------------------------------------------------------------
# Fused kernel: conv1 + conv2 + conv3 + flatten + dense, all in VMEM.
# ---------------------------------------------------------------------------
def _fused_cnn_kernel(p1_ref, w1_ref, w2_ref, w3_ref, wd_ref, bd_ref, out_ref):
    f32 = jnp.float32

    # conv1: [C1, 4] @ [4, M1] -> [C1, M1]   (input patches pre-stacked)
    h1 = jnp.dot(w1_ref[...], p1_ref[...], preferred_element_type=f32)

    # conv2: 4 tap matmuls on contiguous, 128-aligned column blocks of h1.
    M1 = h1.shape[1]
    M2 = M1 // 4
    h2 = jnp.dot(w2_ref[0], h1[:, :M2], preferred_element_type=f32)
    for t in range(1, 4):
        h2 = h2 + jnp.dot(w2_ref[t], h1[:, t * M2:(t + 1) * M2],
                          preferred_element_type=f32)

    # conv3: same pattern.
    M3 = M2 // 4
    h3 = jnp.dot(w3_ref[0], h2[:, :M3], preferred_element_type=f32)
    for t in range(1, 4):
        h3 = h3 + jnp.dot(w3_ref[t], h2[:, t * M3:(t + 1) * M3],
                          preferred_element_type=f32)

    # flatten + dense.  h3 is [C3, B*Ksp] with columns ordered (b, y, x);
    # wd_ref is [N, C3, Ksp] which is exactly PyTorch's (c, h, w) flatten.
    wd = wd_ref[...]                                   # [N, C3, Ksp]
    Ksp = wd.shape[2]
    Bsz = h3.shape[1] // Ksp
    cols = []
    for b in range(Bsz):                               # tiny, static unroll
        g = h3[:, b * Ksp:(b + 1) * Ksp]               # [C3, Ksp]
        prod = wd * g[None, :, :]                      # [N, C3, Ksp] (VPU)
        s = jnp.sum(jnp.sum(prod, axis=2), axis=1, keepdims=True)  # [N, 1]
        cols.append(s + bd_ref[...])
    out_ref[...] = jnp.concatenate(cols, axis=1)       # [N, B]


# ---------------------------------------------------------------------------
# Hoisted (call-once) weight re-layouts: PyTorch layouts -> kernel layouts.
# ---------------------------------------------------------------------------
def prepare_params(params):
    w1, w2, w3 = params["w1"], params["w2"], params["w3"]
    C1, C2, C3 = w1.shape[0], w2.shape[0], w3.shape[0]
    N = params["wd"].shape[0]
    return {
        # conv1 (Cin=1): [C1, kh*kw]
        "w1m": w1.reshape(C1, 4),
        # conv2/3 tap matrices: [tap=kh*2+kw, Cout, Cin]
        "w2t": jnp.transpose(w2, (2, 3, 0, 1)).reshape(4, C2, w2.shape[1]),
        "w3t": jnp.transpose(w3, (2, 3, 0, 1)).reshape(4, C3, w3.shape[1]),
        # dense: [N, C3, F*F]  (PyTorch flatten order is (c, h, w))
        "wd3": params["wd"].reshape(N, C3, -1),
        "bd2": params["bd"].reshape(N, 1),
    }


# ---------------------------------------------------------------------------
# Forward pass.
# ---------------------------------------------------------------------------
def cnn_fcgr_forward(x_nchw, prep):
    B, Cin, H, W = x_nchw.shape
    assert Cin == 1 and H == W and H % 8 == 0
    F = H // 8                       # final spatial resolution after 3 convs
    Ksp = F * F
    C1 = prep["w1m"].shape[0]
    C2 = prep["w2t"].shape[1]
    C3 = prep["w3t"].shape[1]
    N = prep["wd3"].shape[0]
    M1 = 16 * B * Ksp

    # Hierarchical space-to-depth of the raw input (one tiny XLA op):
    # rows = conv1 tap (kh1,kw1); cols = (kh2,kw2,kh3,kw3, b, y, x).
    xr = x_nchw.reshape(B, F, 2, 2, 2, F, 2, 2, 2)
    p1 = xr.transpose(4, 8, 3, 7, 2, 6, 0, 1, 5).reshape(4, M1)

    flops = 2 * (C1 * 4 * M1 + 4 * C2 * C1 * (M1 // 4)
                 + 4 * C3 * C2 * (M1 // 16) + B * N * C3 * Ksp)
    bytes_accessed = 4 * (4 * M1 + 4 * C1 + 4 * C2 * C1 + 4 * C3 * C2
                          + N * C3 * Ksp + N + N * B)

    out_t = pl.pallas_call(
        _fused_cnn_kernel,
        out_shape=jax.ShapeDtypeStruct((N, B), jnp.float32),
        cost_estimate=pl.CostEstimate(flops=flops, transcendentals=0,
                                      bytes_accessed=bytes_accessed),
        compiler_params=pltpu.CompilerParams(
            vmem_limit_bytes=16 * 1024 * 1024),
    )(p1, prep["w1m"], prep["w2t"], prep["w3t"], prep["wd3"], prep["bd2"])

    return out_t.T                   # [B, num_classes]


# ---------------------------------------------------------------------------
# Pure-JAX reference (lax.conv) for correctness checking.
# ---------------------------------------------------------------------------
def reference_forward(x, params):
    dn = ("NCHW", "OIHW", "NCHW")
    h = jax.lax.conv_general_dilated(x, params["w1"], (2, 2), "VALID",
                                     dimension_numbers=dn)
    h = jax.lax.conv_general_dilated(h, params["w2"], (2, 2), "VALID",
                                     dimension_numbers=dn)
    h = jax.lax.conv_general_dilated(h, params["w3"], (2, 2), "VALID",
                                     dimension_numbers=dn)
    flat = h.reshape(h.shape[0], -1)          # PyTorch NCHW flatten
    return flat @ params["wd"].T + params["bd"]


# ---------------------------------------------------------------------------
# Deterministic parameter init + demo run.
# ---------------------------------------------------------------------------
def init_params(key, num_classes, kmer=6):
    k1, k2, k3, k4, k5 = jax.random.split(key, 5)
    dense_in = 4 * 4 * 4 ** (kmer - 3)
    return {
        "w1": 0.1 * jax.random.normal(k1, (24, 1, 2, 2), jnp.float32),
        "w2": 0.1 * jax.random.normal(k2, (20, 24, 2, 2), jnp.float32),
        "w3": 0.1 * jax.random.normal(k3, (16, 20, 2, 2), jnp.float32),
        "wd": 0.1 * jax.random.normal(k4, (num_classes, dense_in), jnp.float32),
        "bd": 0.1 * jax.random.normal(k5, (num_classes,), jnp.float32),
    }


if __name__ == "__main__":
    num_classes = 10
    kmer = 6                         # FCGR resolution 2^kmer = 64
    B = 2

    key = jax.random.PRNGKey(0)
    kx, kp = jax.random.split(key)
    x = jax.random.normal(kx, (B, 1, 2 ** kmer, 2 ** kmer), jnp.float32)
    params = init_params(kp, num_classes, kmer)
    prep = prepare_params(params)    # hoisted weight re-layouts (call once)

    fwd = jax.jit(cnn_fcgr_forward)
    out = jax.block_until_ready(fwd(x, prep))
    ref = jax.block_until_ready(reference_forward(x, params))

    assert out.shape == (B, num_classes), out.shape
    max_err = float(jnp.max(jnp.abs(out - ref)))
    assert jnp.allclose(out, ref, rtol=1e-4, atol=1e-4), max_err
    print("KERNEL_OK")
</pallas_src>

<mosaic_0001>
module attributes {stable_mosaic.version = 11 : i64} {
  func.func @_fused_cnn_kernel(%arg0: memref<4x2048xf32, #tpu.memory_space<vmem>>, %arg1: memref<24x4xf32, #tpu.memory_space<vmem>>, %arg2: memref<4x20x24xf32, #tpu.memory_space<vmem>>, %arg3: memref<4x16x20xf32, #tpu.memory_space<vmem>>, %arg4: memref<10x16x64xf32, #tpu.memory_space<vmem>>, %arg5: memref<10x1xf32, #tpu.memory_space<vmem>>, %arg6: memref<10x2xf32, #tpu.memory_space<vmem>>) attributes {dimension_semantics = [], scalar_prefetch = 0 : i64, scratch_operands = 0 : i64, tpu.core_type = #tpu.core_type<tc>} {
    %c0 = arith.constant 0 : index
    %c0_0 = arith.constant 0 : index
    %0 = vector.load %arg1[%c0, %c0_0] : memref<24x4xf32, #tpu.memory_space<vmem>>, vector<24x4xf32>
    %c0_1 = arith.constant 0 : index
    %c0_2 = arith.constant 0 : index
    %1 = vector.load %arg0[%c0_1, %c0_2] : memref<4x2048xf32, #tpu.memory_space<vmem>>, vector<4x2048xf32>
    %cst = arith.constant dense<0.000000e+00> : vector<24x2048xf32>
    %2 = tpu.matmul %0, %1, %cst {dimension_numbers = #tpu.dot_dimension_numbers<[1], [0], [0], [1], [0, 0, 1, 1], [], []>} : vector<24x4xf32>, vector<4x2048xf32>, vector<24x2048xf32> -> vector<24x2048xf32>
    %c0_3 = arith.constant 0 : index
    %c0_4 = arith.constant 0 : index
    %c0_5 = arith.constant 0 : index
    %3 = vector.load %arg2[%c0_3, %c0_4, %c0_5] : memref<4x20x24xf32, #tpu.memory_space<vmem>>, vector<1x20x24xf32>
    %4 = vector.shape_cast %3 : vector<1x20x24xf32> to vector<20x24xf32>
    %5 = vector.extract_strided_slice %2 {offsets = [0, 0], sizes = [24, 512], strides = [1, 1]} : vector<24x2048xf32> to vector<24x512xf32>
    %cst_6 = arith.constant dense<0.000000e+00> : vector<20x512xf32>
    %6 = tpu.matmul %4, %5, %cst_6 {dimension_numbers = #tpu.dot_dimension_numbers<[1], [0], [0], [1], [0, 0, 1, 1], [], []>} : vector<20x24xf32>, vector<24x512xf32>, vector<20x512xf32> -> vector<20x512xf32>
    %c1 = arith.constant 1 : index
    %c0_7 = arith.constant 0 : index
    %c0_8 = arith.constant 0 : index
    %7 = vector.load %arg2[%c1, %c0_7, %c0_8] : memref<4x20x24xf32, #tpu.memory_space<vmem>>, vector<1x20x24xf32>
    %8 = vector.shape_cast %7 : vector<1x20x24xf32> to vector<20x24xf32>
    %9 = vector.extract_strided_slice %2 {offsets = [0, 512], sizes = [24, 512], strides = [1, 1]} : vector<24x2048xf32> to vector<24x512xf32>
    %cst_9 = arith.constant dense<0.000000e+00> : vector<20x512xf32>
    %10 = tpu.matmul %8, %9, %cst_9 {dimension_numbers = #tpu.dot_dimension_numbers<[1], [0], [0], [1], [0, 0, 1, 1], [], []>} : vector<20x24xf32>, vector<24x512xf32>, vector<20x512xf32> -> vector<20x512xf32>
    %11 = arith.addf %6, %10 : vector<20x512xf32>
    %c2 = arith.constant 2 : index
    %c0_10 = arith.constant 0 : index
    %c0_11 = arith.constant 0 : index
    %12 = vector.load %arg2[%c2, %c0_10, %c0_11] : memref<4x20x24xf32, #tpu.memory_space<vmem>>, vector<1x20x24xf32>
    %13 = vector.shape_cast %12 : vector<1x20x24xf32> to vector<20x24xf32>
    %14 = vector.extract_strided_slice %2 {offsets = [0, 1024], sizes = [24, 512], strides = [1, 1]} : vector<24x2048xf32> to vector<24x512xf32>
    %cst_12 = arith.constant dense<0.000000e+00> : vector<20x512xf32>
    %15 = tpu.matmul %13, %14, %cst_12 {dimension_numbers = #tpu.dot_dimension_numbers<[1], [0], [0], [1], [0, 0, 1, 1], [], []>} : vector<20x24xf32>, vector<24x512xf32>, vector<20x512xf32> -> vector<20x512xf32>
    %16 = arith.addf %11, %15 : vector<20x512xf32>
    %c3 = arith.constant 3 : index
    %c0_13 = arith.constant 0 : index
    %c0_14 = arith.constant 0 : index
    %17 = vector.load %arg2[%c3, %c0_13, %c0_14] : memref<4x20x24xf32, #tpu.memory_space<vmem>>, vector<1x20x24xf32>
    %18 = vector.shape_cast %17 : vector<1x20x24xf32> to vector<20x24xf32>
    %19 = vector.extract_strided_slice %2 {offsets = [0, 1536], sizes = [24, 512], strides = [1, 1]} : vector<24x2048xf32> to vector<24x512xf32>
    %cst_15 = arith.constant dense<0.000000e+00> : vector<20x512xf32>
    %20 = tpu.matmul %18, %19, %cst_15 {dimension_numbers = #tpu.dot_dimension_numbers<[1], [0], [0], [1], [0, 0, 1, 1], [], []>} : vector<20x24xf32>, vector<24x512xf32>, vector<20x512xf32> -> vector<20x512xf32>
    %21 = arith.addf %16, %20 : vector<20x512xf32>
    %c0_16 = arith.constant 0 : index
    %c0_17 = arith.constant 0 : index
    %c0_18 = arith.constant 0 : index
    %22 = vector.load %arg3[%c0_16, %c0_17, %c0_18] : memref<4x16x20xf32, #tpu.memory_space<vmem>>, vector<1x16x20xf32>
    %23 = vector.shape_cast %22 : vector<1x16x20xf32> to vector<16x20xf32>
    %24 = vector.extract_strided_slice %21 {offsets = [0, 0], sizes = [20, 128], strides = [1, 1]} : vector<20x512xf32> to vector<20x128xf32>
    %cst_19 = arith.constant dense<0.000000e+00> : vector<16x128xf32>
    %25 = tpu.matmul %23, %24, %cst_19 {dimension_numbers = #tpu.dot_dimension_numbers<[1], [0], [0], [1], [0, 0, 1, 1], [], []>} : vector<16x20xf32>, vector<20x128xf32>, vector<16x128xf32> -> vector<16x128xf32>
    %c1_20 = arith.constant 1 : index
    %c0_21 = arith.constant 0 : index
    %c0_22 = arith.constant 0 : index
    %26 = vector.load %arg3[%c1_20, %c0_21, %c0_22] : memref<4x16x20xf32, #tpu.memory_space<vmem>>, vector<1x16x20xf32>
    %27 = vector.shape_cast %26 : vector<1x16x20xf32> to vector<16x20xf32>
    %28 = vector.extract_strided_slice %21 {offsets = [0, 128], sizes = [20, 128], strides = [1, 1]} : vector<20x512xf32> to vector<20x128xf32>
    %cst_23 = arith.constant dense<0.000000e+00> : vector<16x128xf32>
    %29 = tpu.matmul %27, %28, %cst_23 {dimension_numbers = #tpu.dot_dimension_numbers<[1], [0], [0], [1], [0, 0, 1, 1], [], []>} : vector<16x20xf32>, vector<20x128xf32>, vector<16x128xf32> -> vector<16x128xf32>
    %30 = arith.addf %25, %29 : vector<16x128xf32>
    %c2_24 = arith.constant 2 : index
    %c0_25 = arith.constant 0 : index
    %c0_26 = arith.constant 0 : index
    %31 = vector.load %arg3[%c2_24, %c0_25, %c0_26] : memref<4x16x20xf32, #tpu.memory_space<vmem>>, vector<1x16x20xf32>
    %32 = vector.shape_cast %31 : vector<1x16x20xf32> to vector<16x20xf32>
    %33 = vector.extract_strided_slice %21 {offsets = [0, 256], sizes = [20, 128], strides = [1, 1]} : vector<20x512xf32> to vector<20x128xf32>
    %cst_27 = arith.constant dense<0.000000e+00> : vector<16x128xf32>
    %34 = tpu.matmul %32, %33, %cst_27 {dimension_numbers = #tpu.dot_dimension_numbers<[1], [0], [0], [1], [0, 0, 1, 1], [], []>} : vector<16x20xf32>, vector<20x128xf32>, vector<16x128xf32> -> vector<16x128xf32>
    %35 = arith.addf %30, %34 : vector<16x128xf32>
    %c3_28 = arith.constant 3 : index
    %c0_29 = arith.constant 0 : index
    %c0_30 = arith.constant 0 : index
    %36 = vector.load %arg3[%c3_28, %c0_29, %c0_30] : memref<4x16x20xf32, #tpu.memory_space<vmem>>, vector<1x16x20xf32>
    %37 = vector.shape_cast %36 : vector<1x16x20xf32> to vector<16x20xf32>
    %38 = vector.extract_strided_slice %21 {offsets = [0, 384], sizes = [20, 128], strides = [1, 1]} : vector<20x512xf32> to vector<20x128xf32>
    %cst_31 = arith.constant dense<0.000000e+00> : vector<16x128xf32>
    %39 = tpu.matmul %37, %38, %cst_31 {dimension_numbers = #tpu.dot_dimension_numbers<[1], [0], [0], [1], [0, 0, 1, 1], [], []>} : vector<16x20xf32>, vector<20x128xf32>, vector<16x128xf32> -> vector<16x128xf32>
    %40 = arith.addf %35, %39 : vector<16x128xf32>
    %c0_32 = arith.constant 0 : index
    %c0_33 = arith.constant 0 : index
    %c0_34 = arith.constant 0 : index
    %41 = vector.load %arg4[%c0_32, %c0_33, %c0_34] : memref<10x16x64xf32, #tpu.memory_space<vmem>>, vector<10x16x64xf32>
    %42 = vector.extract_strided_slice %40 {offsets = [0, 0], sizes = [16, 64], strides = [1, 1]} : vector<16x128xf32> to vector<16x64xf32>
    %43 = vector.shape_cast %42 : vector<16x64xf32> to vector<1x16x64xf32>
    %44 = vector.broadcast %43 : vector<1x16x64xf32> to vector<10x16x64xf32>
    %45 = arith.mulf %41, %44 : vector<10x16x64xf32>
    %cst_35 = arith.constant dense<0.000000e+00> : vector<10x16xf32>
    %46 = vector.multi_reduction <add>, %45, %cst_35 [2] : vector<10x16x64xf32> to vector<10x16xf32>
    %cst_36 = arith.constant dense<0.000000e+00> : vector<10xf32>
    %47 = vector.multi_reduction <add>, %46, %cst_36 [1] : vector<10x16xf32> to vector<10xf32>
    %48 = vector.shape_cast %47 : vector<10xf32> to vector<10x1xf32>
    %c0_37 = arith.constant 0 : index
    %c0_38 = arith.constant 0 : index
    %49 = vector.load %arg5[%c0_37, %c0_38] : memref<10x1xf32, #tpu.memory_space<vmem>>, vector<10x1xf32>
    %50 = arith.addf %48, %49 : vector<10x1xf32>
    %51 = vector.extract_strided_slice %40 {offsets = [0, 64], sizes = [16, 64], strides = [1, 1]} : vector<16x128xf32> to vector<16x64xf32>
    %52 = vector.shape_cast %51 : vector<16x64xf32> to vector<1x16x64xf32>
    %53 = vector.broadcast %52 : vector<1x16x64xf32> to vector<10x16x64xf32>
    %54 = arith.mulf %41, %53 : vector<10x16x64xf32>
    %cst_39 = arith.constant dense<0.000000e+00> : vector<10x16xf32>
    %55 = vector.multi_reduction <add>, %54, %cst_39 [2] : vector<10x16x64xf32> to vector<10x16xf32>
    %cst_40 = arith.constant dense<0.000000e+00> : vector<10xf32>
    %56 = vector.multi_reduction <add>, %55, %cst_40 [1] : vector<10x16xf32> to vector<10xf32>
    %57 = vector.shape_cast %56 : vector<10xf32> to vector<10x1xf32>
    %c0_41 = arith.constant 0 : index
    %c0_42 = arith.constant 0 : index
    %58 = vector.load %arg5[%c0_41, %c0_42] : memref<10x1xf32, #tpu.memory_space<vmem>>, vector<10x1xf32>
    %59 = arith.addf %57, %58 : vector<10x1xf32>
    %60 = tpu.concatenate %50, %59 in 1 : vector<10x1xf32>, vector<10x1xf32> -> vector<10x2xf32>
    %c0_43 = arith.constant 0 : index
    %c0_44 = arith.constant 0 : index
    %61 = vector.load %arg6[%c0_43, %c0_44] : memref<10x2xf32, #tpu.memory_space<vmem>>, vector<10x2xf32>
    tpu.vector_store %arg6[%c0_43, %c0_44], %60 {strides = array<i32>} : memref<10x2xf32, #tpu.memory_space<vmem>>, vector<10x2xf32>,
    return
  }
}

</mosaic_0001>

<llo_original>
// kernel: cnn_fcgr_forward.1
$region0: #{cnn_fcgr_forward.1}
  #allocation0 [shape = 'u32[]', space=smem, size = 0x4, offset = 0x4, fixed_abs, tag = 'smem constant byte address 0x4 - core index']
  #allocation1 [shape = 'u32[144,128]{1,0:T(1,128)}', space=vmem, size = 0x12000, scoped, tag = 'internal scratch']
  %s0 = inlined_call_operand.vmem [shape: f32[4,2048], index: 0, kind: input, shape index: {}]
  %s1 = inlined_call_operand.vmem [shape: f32[24,4], index: 1, kind: input, shape index: {}]
  %s2 = inlined_call_operand.vmem [shape: f32[4,20,24], index: 2, kind: input, shape index: {}]
  %s3 = inlined_call_operand.vmem [shape: f32[4,16,20], index: 3, kind: input, shape index: {}]
  %s4 = inlined_call_operand.vmem [shape: f32[10,16,64], index: 4, kind: input, shape index: {}]
  %s5 = inlined_call_operand.vmem [shape: f32[10,1], index: 5, kind: input, shape index: {}]
  %s6 = inlined_call_operand.vmem [shape: f32[10,2], index: 6, kind: output, shape index: {}]
  %s7 = sld [smem:[#allocation0]]
  $region34: #{cnn_fcgr_forward.1} parent=0
    _
  %s9 = ssub.s32 1, %s7
  %s10 = scalar_select 0, %s9, %s7
  // Predicated region
  $region2: #{cnn_fcgr_forward.1} parent=0 // pred_check
    _
  $region3: #{cnn_fcgr_forward.1} parent=0 // pred_check_branch
    %12 = sbr.rel (0) target = $region5
  $region4: #{cnn_fcgr_forward.1} parent=0 // pred_region
    _
  $region5: #{cnn_fcgr_forward.1} parent=0 // pred_fallthru
    _
  // Predicated region
  $region6: #{cnn_fcgr_forward.1} parent=0 // pred_check
    _
  $region7: #{cnn_fcgr_forward.1} parent=0 // pred_check_branch
    %14 = sbr.rel (0) target = $region9
  $region8: #{cnn_fcgr_forward.1} parent=0 // pred_region
    _
  $region9: #{cnn_fcgr_forward.1} parent=0 // pred_fallthru
    _
  // Predicated region
  $region10: #{cnn_fcgr_forward.1} parent=0 // pred_check
    _
  $region11: #{cnn_fcgr_forward.1} parent=0 // pred_check_branch
    %16 = sbr.rel (0) target = $region13
  $region12: #{cnn_fcgr_forward.1} parent=0 // pred_region
    _
  $region13: #{cnn_fcgr_forward.1} parent=0 // pred_fallthru
    _
  // Predicated region
  $region14: #{cnn_fcgr_forward.1} parent=0 // pred_check
    _
  $region15: #{cnn_fcgr_forward.1} parent=0 // pred_check_branch
    %18 = sbr.rel (0) target = $region17
  $region16: #{cnn_fcgr_forward.1} parent=0 // pred_region
    _
  $region17: #{cnn_fcgr_forward.1} parent=0 // pred_fallthru
    _
  // Predicated region
  $region18: #{cnn_fcgr_forward.1} parent=0 // pred_check
    _
  $region19: #{cnn_fcgr_forward.1} parent=0 // pred_check_branch
    %20 = sbr.rel (0) target = $region21
  $region20: #{cnn_fcgr_forward.1} parent=0 // pred_region
    _
  $region21: #{cnn_fcgr_forward.1} parent=0 // pred_fallthru
    _
  // Predicated region
  $region22: #{cnn_fcgr_forward.1} parent=0 // pred_check
    _
  $region23: #{cnn_fcgr_forward.1} parent=0 // pred_check_branch
    %22 = sbr.rel (0) target = $region25
  $region24: #{cnn_fcgr_forward.1} parent=0 // pred_region
    _
  $region25: #{cnn_fcgr_forward.1} parent=0 // pred_fallthru
    _
  %v23 = vld [vmem:[%s1] sm:$0xff]
  %v24 = vld [vmem:[%s1 + $0x8] sm:$0xff]
  %v25 = vld [vmem:[%s1 + $0x10] sm:$0xff]
  %v26 = vld [vmem:[%s0] sm:$0xff]
  %v27 = vld [vmem:[%s0 + $0x8] sm:$0xff]
  %v28 = vld [vmem:[%s0 + $0x10] sm:$0xff]
  %v29 = vld [vmem:[%s0 + $0x18] sm:$0xff]
  %v30 = vld [vmem:[%s0 + $0x20] sm:$0xff]
  %v31 = vld [vmem:[%s0 + $0x28] sm:$0xff]
  %v32 = vld [vmem:[%s0 + $0x30] sm:$0xff]
  %v33 = vld [vmem:[%s0 + $0x38] sm:$0xff]
  %v42 = vcombine.high %v26, %v26
  %v43 = vcombine.high %v27, %v27
  %v44 = vcombine.high %v28, %v28
  %v45 = vcombine.high %v29, %v29
  %v46 = vcombine.high %v30, %v30
  %v47 = vcombine.high %v31, %v31
  %v48 = vcombine.high %v32, %v32
  %v49 = vcombine.high %v33, %v33
  %vm50 = vcmask 31744
  %v52 = vsel %vm50, %v23, 0
  %v55 = vsel %vm50, %v24, 0
  %v58 = vsel %vm50, %v25, 0
  %vm60 = vcmask 1043456
  %v61 = vsel %vm60, %v26, 0
  %v63 = vsel %vm60, %v42, 0
  %v65 = vsel %vm60, %v27, 0
  %v67 = vsel %vm60, %v43, 0
  %v69 = vsel %vm60, %v28, 0
  %v71 = vsel %vm60, %v44, 0
  %v73 = vsel %vm60, %v29, 0
  %v75 = vsel %vm60, %v45, 0
  %v77 = vsel %vm60, %v30, 0
  %v79 = vsel %vm60, %v46, 0
  %v81 = vsel %vm60, %v31, 0
  %v83 = vsel %vm60, %v47, 0
  %v85 = vsel %vm60, %v32, 0
  %v87 = vsel %vm60, %v48, 0
  %v89 = vsel %vm60, %v33, 0
  %v91 = vsel %vm60, %v49, 0
  %93 = vmatprep.subr.mxu0 %v63
  %94 = vmatpush1.msra.mxu0 %v61
  %95 = vmatprep.subr.mxu0 0.0
  %96 = vmatpush1.msra.mxu0 0.0
  %97 = vmatprep.subr.mxu0 0.0
  %98 = vmatpush1.msra.mxu0 0.0
  %99 = vmatprep.subr.mxu0 0.0
  %100 = vmatpush1.msra.mxu0 0.0
  %101 = vmatprep.subr.mxu0 0.0
  %102 = vmatpush1.msra.mxu0 0.0
  %103 = vmatprep.subr.mxu0 0.0
  %104 = vmatpush1.msra.mxu0 0.0
  %105 = vmatprep.subr.mxu0 0.0
  %106 = vmatpush1.msra.mxu0 0.0
  %107 = vmatprep.subr.mxu0 0.0
  %108 = vmatpush1.msra.mxu0 0.0
  %109 = vmatprep.subr.mxu0 0.0
  %110 = vmatpush1.msra.mxu0 0.0
  %111 = vmatprep.subr.mxu0 0.0
  %112 = vmatpush1.msra.mxu0 0.0
  %113 = vmatprep.subr.mxu0 0.0
  %114 = vmatpush1.msra.mxu0 0.0
  %115 = vmatprep.subr.mxu0 0.0
  %116 = vmatpush1.msra.mxu0 0.0
  %117 = vmatprep.subr.mxu0 0.0
  %118 = vmatpush1.msra.mxu0 0.0
  %119 = vmatprep.subr.mxu0 0.0
  %120 = vmatpush1.msra.mxu0 0.0
  %121 = vmatprep.subr.mxu0 0.0
  %122 = vmatpush1.msra.mxu0 0.0
  %123 = vmatprep.subr.mxu0 0.0
  %124 = vmatpush1.msra.mxu0 0.0
  %125 = vmatprep.subr.mxu0 0.0
  %126 = vmatpush1.msra.mxu0 0.0
  %127 = vmatprep.subr.mxu0 0.0
  %128 = vmatpush1.msra.mxu0 0.0
  %129 = vmatprep.subr.mxu0 0.0
  %130 = vmatpush1.msra.mxu0 0.0
  %131 = vmatprep.subr.mxu0 0.0
  %132 = vmatpush1.msra.mxu0 0.0
  %133 = vmatprep.subr.mxu0 0.0
  %134 = vmatpush1.msra.mxu0 0.0
  %135 = vmatprep.subr.mxu0 0.0
  %136 = vmatpush1.msra.mxu0 0.0
  %137 = vmatprep.subr.mxu0 0.0
  %138 = vmatpush1.msra.mxu0 0.0
  %139 = vmatprep.subr.mxu0 0.0
  %140 = vmatpush1.msra.mxu0 0.0
  %141 = vmatprep.subr.mxu0 0.0
  %142 = vmatpush1.msra.mxu0 0.0
  %143 = vmatprep.subr.mxu0 0.0
  %144 = vmatpush1.msra.mxu0 0.0
  %145 = vmatprep.subr.mxu0 0.0
  %146 = vmatpush1.msra.mxu0 0.0
  %147 = vmatprep.subr.mxu0 0.0
  %148 = vmatpush1.msra.mxu0 0.0
  %149 = vmatprep.subr.mxu0 0.0
  %150 = vmatpush1.msra.mxu0 0.0
  %151 = vmatprep.subr.mxu0 0.0
  %152 = vmatpush1.msra.mxu0 0.0
  %153 = vmatprep.subr.mxu0 0.0
  %154 = vmatpush1.msra.mxu0 0.0
  %155 = vmatprep.subr.mxu0 0.0
  %156 = vmatpush1.msra.mxu0 0.0
  %157 = vmatprep.mubr.f32.mxu0 0.0
  %158 = vmatmul.mubr.f32.gmra.mrb[0].mxu0 %v52
  %v159 = vpop.f32.mrb[0].mxu0
  %v160 = vadd.f32 0.0, %v159
  %v161 = vpop.f32.mrb[0].mxu0
  %v162 = vadd.f32 0.0, %v161
  %163 = vmatprep.mubr.f32.mxu0 0.0
  %164 = vmatmul.mubr.f32.gmra.mrb[0].mxu0 %v55
  %v165 = vpop.f32.mrb[0].mxu0
  %v166 = vadd.f32 0.0, %v165
  %v167 = vpop.f32.mrb[0].mxu0
  %v168 = vadd.f32 0.0, %v167
  %169 = vmatprep.mubr.f32.mxu0 0.0
  %170 = vmatmul.mubr.f32.gmra.mrb[0].mxu0 %v58
  %v171 = vpop.f32.mrb[0].mxu0
  %v172 = vadd.f32 0.0, %v171
  %v173 = vpop.f32.mrb[0].mxu0
  %v174 = vadd.f32 0.0, %v173
  %175 = vdwg.mxu0
  %176 = vmatprep.subr.mxu0 %v67
  %177 = vmatpush1.msra.mxu0 %v65
  %178 = vmatprep.subr.mxu0 0.0
  %179 = vmatpush1.msra.mxu0 0.0
  %180 = vmatprep.subr.mxu0 0.0
  %181 = vmatpush1.msra.mxu0 0.0
  %182 = vmatprep.subr.mxu0 0.0
  %183 = vmatpush1.msra.mxu0 0.0
  %184 = vmatprep.subr.mxu0 0.0
  %185 = vmatpush1.msra.mxu0 0.0
  %186 = vmatprep.subr.mxu0 0.0
  %187 = vmatpush1.msra.mxu0 0.0
  %188 = vmatprep.subr.mxu0 0.0
  %189 = vmatpush1.msra.mxu0 0.0
  %190 = vmatprep.subr.mxu0 0.0
  %191 = vmatpush1.msra.mxu0 0.0
  %192 = vmatprep.subr.mxu0 0.0
  %193 = vmatpush1.msra.mxu0 0.0
  %194 = vmatprep.subr.mxu0 0.0
  %195 = vmatpush1.msra.mxu0 0.0
  %196 = vmatprep.subr.mxu0 0.0
  %197 = vmatpush1.msra.mxu0 0.0
  %198 = vmatprep.subr.mxu0 0.0
  %199 = vmatpush1.msra.mxu0 0.0
  %200 = vmatprep.subr.mxu0 0.0
  %201 = vmatpush1.msra.mxu0 0.0
  %202 = vmatprep.subr.mxu0 0.0
  %203 = vmatpush1.msra.mxu0 0.0
  %204 = vmatprep.subr.mxu0 0.0
  %205 = vmatpush1.msra.mxu0 0.0
  %206 = vmatprep.subr.mxu0 0.0
  %207 = vmatpush1.msra.mxu0 0.0
  %208 = vmatprep.subr.mxu0 0.0
  %209 = vmatpush1.msra.mxu0 0.0
  %210 = vmatprep.subr.mxu0 0.0
  %211 = vmatpush1.msra.mxu0 0.0
  %212 = vmatprep.subr.mxu0 0.0
  %213 = vmatpush1.msra.mxu0 0.0
  %214 = vmatprep.subr.mxu0 0.0
  %215 = vmatpush1.msra.mxu0 0.0
  %216 = vmatprep.subr.mxu0 0.0
  %217 = vmatpush1.msra.mxu0 0.0
  %218 = vmatprep.subr.mxu0 0.0
  %219 = vmatpush1.msra.mxu0 0.0
  %220 = vmatprep.subr.mxu0 0.0
  %221 = vmatpush1.msra.mxu0 0.0
  %222 = vmatprep.subr.mxu0 0.0
  %223 = vmatpush1.msra.mxu0 0.0
  %224 = vmatprep.subr.mxu0 0.0
  %225 = vmatpush1.msra.mxu0 0.0
  %226 = vmatprep.subr.mxu0 0.0
  %227 = vmatpush1.msra.mxu0 0.0
  %228 = vmatprep.subr.mxu0 0.0
  %229 = vmatpush1.msra.mxu0 0.0
  %230 = vmatprep.subr.mxu0 0.0
  %231 = vmatpush1.msra.mxu0 0.0
  %232 = vmatprep.subr.mxu0 0.0
  %233 = vmatpush1.msra.mxu0 0.0
  %234 = vmatprep.subr.mxu0 0.0
  %235 = vmatpush1.msra.mxu0 0.0
  %236 = vmatprep.subr.mxu0 0.0
  %237 = vmatpush1.msra.mxu0 0.0
  %238 = vmatprep.subr.mxu0 0.0
  %239 = vmatpush1.msra.mxu0 0.0
  %240 = vmatprep.mubr.f32.mxu0 0.0
  %241 = vmatmul.mubr.f32.gmra.mrb[0].mxu0 %v52
  %v242 = vpop.f32.mrb[0].mxu0
  %v243 = vadd.f32 0.0, %v242
  %v244 = vpop.f32.mrb[0].mxu0
  %v245 = vadd.f32 0.0, %v244
  %246 = vmatprep.mubr.f32.mxu0 0.0
  %247 = vmatmul.mubr.f32.gmra.mrb[0].mxu0 %v55
  %v248 = vpop.f32.mrb[0].mxu0
  %v249 = vadd.f32 0.0, %v248
  %v250 = vpop.f32.mrb[0].mxu0
  %v251 = vadd.f32 0.0, %v250
  %252 = vmatprep.mubr.f32.mxu0 0.0
  %253 = vmatmul.mubr.f32.gmra.mrb[0].mxu0 %v58
  %v254 = vpop.f32.mrb[0].mxu0
  %v255 = vadd.f32 0.0, %v254
  %v256 = vpop.f32.mrb[0].mxu0
  %v257 = vadd.f32 0.0, %v256
  %258 = vdwg.mxu0
  %259 = vmatprep.subr.mxu0 %v71
  %260 = vmatpush1.msra.mxu0 %v69
  %261 = vmatprep.subr.mxu0 0.0
  %262 = vmatpush1.msra.mxu0 0.0
  %263 = vmatprep.subr.mxu0 0.0
  %264 = vmatpush1.msra.mxu0 0.0
  %265 = vmatprep.subr.mxu0 0.0
  %266 = vmatpush1.msra.mxu0 0.0
  %267 = vmatprep.subr.mxu0 0.0
  %268 = vmatpush1.msra.mxu0 0.0
  %269 = vmatprep.subr.mxu0 0.0
  %270 = vmatpush1.msra.mxu0 0.0
  %271 = vmatprep.subr.mxu0 0.0
  %272 = vmatpush1.msra.mxu0 0.0
  %273 = vmatprep.subr.mxu0 0.0
  %274 = vmatpush1.msra.mxu0 0.0
  %275 = vmatprep.subr.mxu0 0.0
  %276 = vmatpush1.msra.mxu0 0.0
  %277 = vmatprep.subr.mxu0 0.0
  %278 = vmatpush1.msra.mxu0 0.0
  %279 = vmatprep.subr.mxu0 0.0
  %280 = vmatpush1.msra.mxu0 0.0
  %281 = vmatprep.subr.mxu0 0.0
  %282 = vmatpush1.msra.mxu0 0.0
  %283 = vmatprep.subr.mxu0 0.0
  %284 = vmatpush1.msra.mxu0 0.0
  %285 = vmatprep.subr.mxu0 0.0
  %286 = vmatpush1.msra.mxu0 0.0
  %287 = vmatprep.subr.mxu0 0.0
  %288 = vmatpush1.msra.mxu0 0.0
  %289 = vmatprep.subr.mxu0 0.0
  %290 = vmatpush1.msra.mxu0 0.0
  %291 = vmatprep.subr.mxu0 0.0
  %292 = vmatpush1.msra.mxu0 0.0
  %293 = vmatprep.subr.mxu0 0.0
  %294 = vmatpush1.msra.mxu0 0.0
  %295 = vmatprep.subr.mxu0 0.0
  %296 = vmatpush1.msra.mxu0 0.0
  %297 = vmatprep.subr.mxu0 0.0
  %298 = vmatpush1.msra.mxu0 0.0
  %299 = vmatprep.subr.mxu0 0.0
  %300 = vmatpush1.msra.mxu0 0.0
  %301 = vmatprep.subr.mxu0 0.0
  %302 = vmatpush1.msra.mxu0 0.0
  %303 = vmatprep.subr.mxu0 0.0
  %304 = vmatpush1.msra.mxu0 0.0
  %305 = vmatprep.subr.mxu0 0.0
  %306 = vmatpush1.msra.mxu0 0.0
  %307 = vmatprep.subr.mxu0 0.0
  %308 = vmatpush1.msra.mxu0 0.0
  %309 = vmatprep.subr.mxu0 0.0
  %310 = vmatpush1.msra.mxu0 0.0
  %311 = vmatprep.subr.mxu0 0.0
  %312 = vmatpush1.msra.mxu0 0.0
  %313 = vmatprep.subr.mxu0 0.0
  %314 = vmatpush1.msra.mxu0 0.0
  %315 = vmatprep.subr.mxu0 0.0
  %316 = vmatpush1.msra.mxu0 0.0
  %317 = vmatprep.subr.mxu0 0.0
  %318 = vmatpush1.msra.mxu0 0.0
  %319 = vmatprep.subr.mxu0 0.0
  %320 = vmatpush1.msra.mxu0 0.0
  %321 = vmatprep.subr.mxu0 0.0
  %322 = vmatpush1.msra.mxu0 0.0
  %323 = vmatprep.mubr.f32.mxu0 0.0
  %324 = vmatmul.mubr.f32.gmra.mrb[0].mxu0 %v52
  %v325 = vpop.f32.mrb[0].mxu0
  %v326 = vadd.f32 0.0, %v325
  %v327 = vpop.f32.mrb[0].mxu0
  %v328 = vadd.f32 0.0, %v327
  %329 = vmatprep.mubr.f32.mxu0 0.0
  %330 = vmatmul.mubr.f32.gmra.mrb[0].mxu0 %v55
  %v331 = vpop.f32.mrb[0].mxu0
  %v332 = vadd.f32 0.0, %v331
  %v333 = vpop.f32.mrb[0].mxu0
  %v334 = vadd.f32 0.0, %v333
  %335 = vmatprep.mubr.f32.mxu0 0.0
  %336 = vmatmul.mubr.f32.gmra.mrb[0].mxu0 %v58
  %v337 = vpop.f32.mrb[0].mxu0
  %v338 = vadd.f32 0.0, %v337
  %v339 = vpop.f32.mrb[0].mxu0
  %v340 = vadd.f32 0.0, %v339
  %341 = vdwg.mxu0
  %342 = vmatprep.subr.mxu0 %v75
  %343 = vmatpush1.msra.mxu0 %v73
  %344 = vmatprep.subr.mxu0 0.0
  %345 = vmatpush1.msra.mxu0 0.0
  %346 = vmatprep.subr.mxu0 0.0
  %347 = vmatpush1.msra.mxu0 0.0
  %348 = vmatprep.subr.mxu0 0.0
  %349 = vmatpush1.msra.mxu0 0.0
  %350 = vmatprep.subr.mxu0 0.0
  %351 = vmatpush1.msra.mxu0 0.0
  %352 = vmatprep.subr.mxu0 0.0
  %353 = vmatpush1.msra.mxu0 0.0
  %354 = vmatprep.subr.mxu0 0.0
  %355 = vmatpush1.msra.mxu0 0.0
  %356 = vmatprep.subr.mxu0 0.0
  %357 = vmatpush1.msra.mxu0 0.0
  %358 = vmatprep.subr.mxu0 0.0
  %359 = vmatpush1.msra.mxu0 0.0
  %360 = vmatprep.subr.mxu0 0.0
  %361 = vmatpush1.msra.mxu0 0.0
  %362 = vmatprep.subr.mxu0 0.0
  %363 = vmatpush1.msra.mxu0 0.0
  %364 = vmatprep.subr.mxu0 0.0
  %365 = vmatpush1.msra.mxu0 0.0
  %366 = vmatprep.subr.mxu0 0.0
  %367 = vmatpush1.msra.mxu0 0.0
  %368 = vmatprep.subr.mxu0 0.0
  %369 = vmatpush1.msra.mxu0 0.0
  %370 = vmatprep.subr.mxu0 0.0
  %371 = vmatpush1.msra.mxu0 0.0
  %372 = vmatprep.subr.mxu0 0.0
  %373 = vmatpush1.msra.mxu0 0.0
  %374 = vmatprep.subr.mxu0 0.0
  %375 = vmatpush1.msra.mxu0 0.0
  %376 = vmatprep.subr.mxu0 0.0
  %377 = vmatpush1.msra.mxu0 0.0
  %378 = vmatprep.subr.mxu0 0.0
  %379 = vmatpush1.msra.mxu0 0.0
  %380 = vmatprep.subr.mxu0 0.0
  %381 = vmatpush1.msra.mxu0 0.0
  %382 = vmatprep.subr.mxu0 0.0
  %383 = vmatpush1.msra.mxu0 0.0
  %384 = vmatprep.subr.mxu0 0.0
  %385 = vmatpush1.msra.mxu0 0.0
  %386 = vmatprep.subr.mxu0 0.0
  %387 = vmatpush1.msra.mxu0 0.0
  %388 = vmatprep.subr.mxu0 0.0
  %389 = vmatpush1.msra.mxu0 0.0
  %390 = vmatprep.subr.mxu0 0.0
  %391 = vmatpush1.msra.mxu0 0.0
  %392 = vmatprep.subr.mxu0 0.0
  %393 = vmatpush1.msra.mxu0 0.0
  %394 = vmatprep.subr.mxu0 0.0
  %395 = vmatpush1.msra.mxu0 0.0
  %396 = vmatprep.subr.mxu0 0.0
  %397 = vmatpush1.msra.mxu0 0.0
  %398 = vmatprep.subr.mxu0 0.0
  %399 = vmatpush1.msra.mxu0 0.0
  %400 = vmatprep.subr.mxu0 0.0
  %401 = vmatpush1.msra.mxu0 0.0
  %402 = vmatprep.subr.mxu0 0.0
  %403 = vmatpush1.msra.mxu0 0.0
  %404 = vmatprep.subr.mxu0 0.0
  %405 = vmatpush1.msra.mxu0 0.0
  %406 = vmatprep.mubr.f32.mxu0 0.0
  %407 = vmatmul.mubr.f32.gmra.mrb[0].mxu0 %v52
  %v408 = vpop.f32.mrb[0].mxu0
  %v409 = vadd.f32 0.0, %v408
  %v410 = vpop.f32.mrb[0].mxu0
  %v411 = vadd.f32 0.0, %v410
  %412 = vmatprep.mubr.f32.mxu0 0.0
  %413 = vmatmul.mubr.f32.gmra.mrb[0].mxu0 %v55
  %v414 = vpop.f32.mrb[0].mxu0
  %v415 = vadd.f32 0.0, %v414
  %v416 = vpop.f32.mrb[0].mxu0
  %v417 = vadd.f32 0.0, %v416
  %418 = vmatprep.mubr.f32.mxu0 0.0
  %419 = vmatmul.mubr.f32.gmra.mrb[0].mxu0 %v58
  %v420 = vpop.f32.mrb[0].mxu0
  %v421 = vadd.f32 0.0, %v420
  %v422 = vpop.f32.mrb[0].mxu0
  %v423 = vadd.f32 0.0, %v422
  %424 = vdwg.mxu0
  %425 = vmatprep.subr.mxu0 %v79
  %426 = vmatpush1.msra.mxu0 %v77
  %427 = vmatprep.subr.mxu0 0.0
  %428 = vmatpush1.msra.mxu0 0.0
  %429 = vmatprep.subr.mxu0 0.0
  %430 = vmatpush1.msra.mxu0 0.0
  %431 = vmatprep.subr.mxu0 0.0
  %432 = vmatpush1.msra.mxu0 0.0
  %433 = vmatprep.subr.mxu0 0.0
  %434 = vmatpush1.msra.mxu0 0.0
  %435 = vmatprep.subr.mxu0 0.0
  %436 = vmatpush1.msra.mxu0 0.0
  %437 = vmatprep.subr.mxu0 0.0
  %438 = vmatpush1.msra.mxu0 0.0
  %439 = vmatprep.subr.mxu0 0.0
  %440 = vmatpush1.msra.mxu0 0.0
  %441 = vmatprep.subr.mxu0 0.0
  %442 = vmatpush1.msra.mxu0 0.0
  %443 = vmatprep.subr.mxu0 0.0
  %444 = vmatpush1.msra.mxu0 0.0
  %445 = vmatprep.subr.mxu0 0.0
  %446 = vmatpush1.msra.mxu0 0.0
  %447 = vmatprep.subr.mxu0 0.0
  %448 = vmatpush1.msra.mxu0 0.0
  %449 = vmatprep.subr.mxu0 0.0
  %450 = vmatpush1.msra.mxu0 0.0
  %451 = vmatprep.subr.mxu0 0.0
  %452 = vmatpush1.msra.mxu0 0.0
  %453 = vmatprep.subr.mxu0 0.0
  %454 = vmatpush1.msra.mxu0 0.0
  %455 = vmatprep.subr.mxu0 0.0
  %456 = vmatpush1.msra.mxu0 0.0
  %457 = vmatprep.subr.mxu0 0.0
  %458 = vmatpush1.msra.mxu0 0.0
  %459 = vmatprep.subr.mxu0 0.0
  %460 = vmatpush1.msra.mxu0 0.0
  %461 = vmatprep.subr.mxu0 0.0
  %462 = vmatpush1.msra.mxu0 0.0
  %463 = vmatprep.subr.mxu0 0.0
  %464 = vmatpush1.msra.mxu0 0.0
  %465 = vmatprep.subr.mxu0 0.0
  %466 = vmatpush1.msra.mxu0 0.0
  %467 = vmatprep.subr.mxu0 0.0
  %468 = vmatpush1.msra.mxu0 0.0
  %469 = vmatprep.subr.mxu0 0.0
  %470 = vmatpush1.msra.mxu0 0.0
  %471 = vmatprep.subr.mxu0 0.0
  %472 = vmatpush1.msra.mxu0 0.0
  %473 = vmatprep.subr.mxu0 0.0
  %474 = vmatpush1.msra.mxu0 0.0
  %475 = vmatprep.subr.mxu0 0.0
  %476 = vmatpush1.msra.mxu0 0.0
  %477 = vmatprep.subr.mxu0 0.0
  %478 = vmatpush1.msra.mxu0 0.0
  %479 = vmatprep.subr.mxu0 0.0
  %480 = vmatpush1.msra.mxu0 0.0
  %481 = vmatprep.subr.mxu0 0.0
  %482 = vmatpush1.msra.mxu0 0.0
  %483 = vmatprep.subr.mxu0 0.0
  %484 = vmatpush1.msra.mxu0 0.0
  %485 = vmatprep.subr.mxu0 0.0
  %486 = vmatpush1.msra.mxu0 0.0
  %487 = vmatprep.subr.mxu0 0.0
  %488 = vmatpush1.msra.mxu0 0.0
  %489 = vmatprep.mubr.f32.mxu0 0.0
  %490 = vmatmul.mubr.f32.gmra.mrb[0].mxu0 %v52
  %v491 = vpop.f32.mrb[0].mxu0
  %v492 = vadd.f32 0.0, %v491
  %v493 = vpop.f32.mrb[0].mxu0
  %v494 = vadd.f32 0.0, %v493
  %495 = vmatprep.mubr.f32.mxu0 0.0
  %496 = vmatmul.mubr.f32.gmra.mrb[0].mxu0 %v55
  %v497 = vpop.f32.mrb[0].mxu0
  %v498 = vadd.f32 0.0, %v497
  %v499 = vpop.f32.mrb[0].mxu0
  %v500 = vadd.f32 0.0, %v499
  %501 = vmatprep.mubr.f32.mxu0 0.0
  %502 = vmatmul.mubr.f32.gmra.mrb[0].mxu0 %v58
  %v503 = vpop.f32.mrb[0].mxu0
  %v504 = vadd.f32 0.0, %v503
  %v505 = vpop.f32.mrb[0].mxu0
  %v506 = vadd.f32 0.0, %v505
  %507 = vdwg.mxu0
  %508 = vmatprep.subr.mxu0 %v83
  %509 = vmatpush1.msra.mxu0 %v81
  %510 = vmatprep.subr.mxu0 0.0
  %511 = vmatpush1.msra.mxu0 0.0
  %512 = vmatprep.subr.mxu0 0.0
  %513 = vmatpush1.msra.mxu0 0.0
  %514 = vmatprep.subr.mxu0 0.0
  %515 = vmatpush1.msra.mxu0 0.0
  %516 = vmatprep.subr.mxu0 0.0
  %517 = vmatpush1.msra.mxu0 0.0
  %518 = vmatprep.subr.mxu0 0.0
  %519 = vmatpush1.msra.mxu0 0.0
  %520 = vmatprep.subr.mxu0 0.0
  %521 = vmatpush1.msra.mxu0 0.0
  %522 = vmatprep.subr.mxu0 0.0
  %523 = vmatpush1.msra.mxu0 0.0
  %524 = vmatprep.subr.mxu0 0.0
  %525 = vmatpush1.msra.mxu0 0.0
  %526 = vmatprep.subr.mxu0 0.0
  %527 = vmatpush1.msra.mxu0 0.0
  %528 = vmatprep.subr.mxu0 0.0
  %529 = vmatpush1.msra.mxu0 0.0
  %530 = vmatprep.subr.mxu0 0.0
  %531 = vmatpush1.msra.mxu0 0.0
  %532 = vmatprep.subr.mxu0 0.0
  %533 = vmatpush1.msra.mxu0 0.0
  %534 = vmatprep.subr.mxu0 0.0
  %535 = vmatpush1.msra.mxu0 0.0
  %536 = vmatprep.subr.mxu0 0.0
  %537 = vmatpush1.msra.mxu0 0.0
  %538 = vmatprep.subr.mxu0 0.0
  %539 = vmatpush1.msra.mxu0 0.0
  %540 = vmatprep.subr.mxu0 0.0
  %541 = vmatpush1.msra.mxu0 0.0
  %542 = vmatprep.subr.mxu0 0.0
  %543 = vmatpush1.msra.mxu0 0.0
  %544 = vmatprep.subr.mxu0 0.0
  %545 = vmatpush1.msra.mxu0 0.0
  %546 = vmatprep.subr.mxu0 0.0
  %547 = vmatpush1.msra.mxu0 0.0
  %548 = vmatprep.subr.mxu0 0.0
  %549 = vmatpush1.msra.mxu0 0.0
  %550 = vmatprep.subr.mxu0 0.0
  %551 = vmatpush1.msra.mxu0 0.0
  %552 = vmatprep.subr.mxu0 0.0
  %553 = vmatpush1.msra.mxu0 0.0
  %554 = vmatprep.subr.mxu0 0.0
  %555 = vmatpush1.msra.mxu0 0.0
  %556 = vmatprep.subr.mxu0 0.0
  %557 = vmatpush1.msra.mxu0 0.0
  %558 = vmatprep.subr.mxu0 0.0
  %559 = vmatpush1.msra.mxu0 0.0
  %560 = vmatprep.subr.mxu0 0.0
  %561 = vmatpush1.msra.mxu0 0.0
  %562 = vmatprep.subr.mxu0 0.0
  %563 = vmatpush1.msra.mxu0 0.0
  %564 = vmatprep.subr.mxu0 0.0
  %565 = vmatpush1.msra.mxu0 0.0
  %566 = vmatprep.subr.mxu0 0.0
  %567 = vmatpush1.msra.mxu0 0.0
  %568 = vmatprep.subr.mxu0 0.0
  %569 = vmatpush1.msra.mxu0 0.0
  %570 = vmatprep.subr.mxu0 0.0
  %571 = vmatpush1.msra.mxu0 0.0
  %572 = vmatprep.mubr.f32.mxu0 0.0
  %573 = vmatmul.mubr.f32.gmra.mrb[0].mxu0 %v52
  %v574 = vpop.f32.mrb[0].mxu0
  %v575 = vadd.f32 0.0, %v574
  %v576 = vpop.f32.mrb[0].mxu0
  %v577 = vadd.f32 0.0, %v576
  %578 = vmatprep.mubr.f32.mxu0 0.0
  %579 = vmatmul.mubr.f32.gmra.mrb[0].mxu0 %v55
  %v580 = vpop.f32.mrb[0].mxu0
  %v581 = vadd.f32 0.0, %v580
  %v582 = vpop.f32.mrb[0].mxu0
  %v583 = vadd.f32 0.0, %v582
  %584 = vmatprep.mubr.f32.mxu0 0.0
  %585 = vmatmul.mubr.f32.gmra.mrb[0].mxu0 %v58
  %v586 = vpop.f32.mrb[0].mxu0
  %v587 = vadd.f32 0.0, %v586
  %v588 = vpop.f32.mrb[0].mxu0
  %v589 = vadd.f32 0.0, %v588
  %590 = vdwg.mxu0
  %591 = vmatprep.subr.mxu0 %v87
  %592 = vmatpush1.msra.mxu0 %v85
  %593 = vmatprep.subr.mxu0 0.0
  %594 = vmatpush1.msra.mxu0 0.0
  %595 = vmatprep.subr.mxu0 0.0
  %596 = vmatpush1.msra.mxu0 0.0
  %597 = vmatprep.subr.mxu0 0.0
  %598 = vmatpush1.msra.mxu0 0.0
  %599 = vmatprep.subr.mxu0 0.0
  %600 = vmatpush1.msra.mxu0 0.0
  %601 = vmatprep.subr.mxu0 0.0
  %602 = vmatpush1.msra.mxu0 0.0
  %603 = vmatprep.subr.mxu0 0.0
  %604 = vmatpush1.msra.mxu0 0.0
  %605 = vmatprep.subr.mxu0 0.0
  %606 = vmatpush1.msra.mxu0 0.0
  %607 = vmatprep.subr.mxu0 0.0
  %608 = vmatpush1.msra.mxu0 0.0
  %609 = vmatprep.subr.mxu0 0.0
  %610 = vmatpush1.msra.mxu0 0.0
  %611 = vmatprep.subr.mxu0 0.0
  %612 = vmatpush1.msra.mxu0 0.0
  %613 = vmatprep.subr.mxu0 0.0
  %614 = vmatpush1.msra.mxu0 0.0
  %615 = vmatprep.subr.mxu0 0.0
  %616 = vmatpush1.msra.mxu0 0.0
  %617 = vmatprep.subr.mxu0 0.0
  %618 = vmatpush1.msra.mxu0 0.0
  %619 = vmatprep.subr.mxu0 0.0
  %620 = vmatpush1.msra.mxu0 0.0
  %621 = vmatprep.subr.mxu0 0.0
  %622 = vmatpush1.msra.mxu0 0.0
  %623 = vmatprep.subr.mxu0 0.0
  %624 = vmatpush1.msra.mxu0 0.0
  %625 = vmatprep.subr.mxu0 0.0
  %626 = vmatpush1.msra.mxu0 0.0
  %627 = vmatprep.subr.mxu0 0.0
  %628 = vmatpush1.msra.mxu0 0.0
  %629 = vmatprep.subr.mxu0 0.0
  %630 = vmatpush1.msra.mxu0 0.0
  %631 = vmatprep.subr.mxu0 0.0
  %632 = vmatpush1.msra.mxu0 0.0
  %633 = vmatprep.subr.mxu0 0.0
  %634 = vmatpush1.msra.mxu0 0.0
  %635 = vmatprep.subr.mxu0 0.0
  %636 = vmatpush1.msra.mxu0 0.0
  %637 = vmatprep.subr.mxu0 0.0
  %638 = vmatpush1.msra.mxu0 0.0
  %639 = vmatprep.subr.mxu0 0.0
  %640 = vmatpush1.msra.mxu0 0.0
  %641 = vmatprep.subr.mxu0 0.0
  %642 = vmatpush1.msra.mxu0 0.0
  %643 = vmatprep.subr.mxu0 0.0
  %644 = vmatpush1.msra.mxu0 0.0
  %645 = vmatprep.subr.mxu0 0.0
  %646 = vmatpush1.msra.mxu0 0.0
  %647 = vmatprep.subr.mxu0 0.0
  %648 = vmatpush1.msra.mxu0 0.0
  %649 = vmatprep.subr.mxu0 0.0
  %650 = vmatpush1.msra.mxu0 0.0
  %651 = vmatprep.subr.mxu0 0.0
  %652 = vmatpush1.msra.mxu0 0.0
  %653 = vmatprep.subr.mxu0 0.0
  %654 = vmatpush1.msra.mxu0 0.0
  %655 = vmatprep.mubr.f32.mxu0 0.0
  %656 = vmatmul.mubr.f32.gmra.mrb[0].mxu0 %v52
  %v657 = vpop.f32.mrb[0].mxu0
  %v658 = vadd.f32 0.0, %v657
  %v659 = vpop.f32.mrb[0].mxu0
  %v660 = vadd.f32 0.0, %v659
  %661 = vmatprep.mubr.f32.mxu0 0.0
  %662 = vmatmul.mubr.f32.gmra.mrb[0].mxu0 %v55
  %v663 = vpop.f32.mrb[0].mxu0
  %v664 = vadd.f32 0.0, %v663
  %v665 = vpop.f32.mrb[0].mxu0
  %v666 = vadd.f32 0.0, %v665
  %667 = vmatprep.mubr.f32.mxu0 0.0
  %668 = vmatmul.mubr.f32.gmra.mrb[0].mxu0 %v58
  %v669 = vpop.f32.mrb[0].mxu0
  %v670 = vadd.f32 0.0, %v669
  %v671 = vpop.f32.mrb[0].mxu0
  %v672 = vadd.f32 0.0, %v671
  %673 = vdwg.mxu0
  %674 = vmatprep.subr.mxu0 %v91
  %675 = vmatpush1.msra.mxu0 %v89
  %676 = vmatprep.subr.mxu0 0.0
  %677 = vmatpush1.msra.mxu0 0.0
  %678 = vmatprep.subr.mxu0 0.0
  %679 = vmatpush1.msra.mxu0 0.0
  %680 = vmatprep.subr.mxu0 0.0
  %681 = vmatpush1.msra.mxu0 0.0
  %682 = vmatprep.subr.mxu0 0.0
  %683 = vmatpush1.msra.mxu0 0.0
  %684 = vmatprep.subr.mxu0 0.0
  %685 = vmatpush1.msra.mxu0 0.0
  %686 = vmatprep.subr.mxu0 0.0
  %687 = vmatpush1.msra.mxu0 0.0
  %688 = vmatprep.subr.mxu0 0.0
  %689 = vmatpush1.msra.mxu0 0.0
  %690 = vmatprep.subr.mxu0 0.0
  %691 = vmatpush1.msra.mxu0 0.0
  %692 = vmatprep.subr.mxu0 0.0
  %693 = vmatpush1.msra.mxu0 0.0
  %694 = vmatprep.subr.mxu0 0.0
  %695 = vmatpush1.msra.mxu0 0.0
  %696 = vmatprep.subr.mxu0 0.0
  %697 = vmatpush1.msra.mxu0 0.0
  %698 = vmatprep.subr.mxu0 0.0
  %699 = vmatpush1.msra.mxu0 0.0
  %700 = vmatprep.subr.mxu0 0.0
  %701 = vmatpush1.msra.mxu0 0.0
  %702 = vmatprep.subr.mxu0 0.0
  %703 = vmatpush1.msra.mxu0 0.0
  %704 = vmatprep.subr.mxu0 0.0
  %705 = vmatpush1.msra.mxu0 0.0
  %706 = vmatprep.subr.mxu0 0.0
  %707 = vmatpush1.msra.mxu0 0.0
  %708 = vmatprep.subr.mxu0 0.0
  %709 = vmatpush1.msra.mxu0 0.0
  %710 = vmatprep.subr.mxu0 0.0
  %711 = vmatpush1.msra.mxu0 0.0
  %712 = vmatprep.subr.mxu0 0.0
  %713 = vmatpush1.msra.mxu0 0.0
  %714 = vmatprep.subr.mxu0 0.0
  %715 = vmatpush1.msra.mxu0 0.0
  %716 = vmatprep.subr.mxu0 0.0
  %717 = vmatpush1.msra.mxu0 0.0
  %718 = vmatprep.subr.mxu0 0.0
  %719 = vmatpush1.msra.mxu0 0.0
  %720 = vmatprep.subr.mxu0 0.0
  %721 = vmatpush1.msra.mxu0 0.0
  %722 = vmatprep.subr.mxu0 0.0
  %723 = vmatpush1.msra.mxu0 0.0
  %724 = vmatprep.subr.mxu0 0.0
  %725 = vmatpush1.msra.mxu0 0.0
  %726 = vmatprep.subr.mxu0 0.0
  %727 = vmatpush1.msra.mxu0 0.0
  %728 = vmatprep.subr.mxu0 0.0
  %729 = vmatpush1.msra.mxu0 0.0
  %730 = vmatprep.subr.mxu0 0.0
  %731 = vmatpush1.msra.mxu0 0.0
  %732 = vmatprep.subr.mxu0 0.0
  %733 = vmatpush1.msra.mxu0 0.0
  %734 = vmatprep.subr.mxu0 0.0
  %735 = vmatpush1.msra.mxu0 0.0
  %736 = vmatprep.subr.mxu0 0.0
  %737 = vmatpush1.msra.mxu0 0.0
  %738 = vmatprep.mubr.f32.mxu0 0.0
  %739 = vmatmul.mubr.f32.gmra.mrb[0].mxu0 %v52
  %v740 = vpop.f32.mrb[0].mxu0
  %v741 = vadd.f32 0.0, %v740
  %v742 = vpop.f32.mrb[0].mxu0
  %v743 = vadd.f32 0.0, %v742
  %744 = vmatprep.mubr.f32.mxu0 0.0
  %745 = vmatmul.mubr.f32.gmra.mrb[0].mxu0 %v55
  %v746 = vpop.f32.mrb[0].mxu0
  %v747 = vadd.f32 0.0, %v746
  %v748 = vpop.f32.mrb[0].mxu0
  %v749 = vadd.f32 0.0, %v748
  %750 = vmatprep.mubr.f32.mxu0 0.0
  %751 = vmatmul.mubr.f32.gmra.mrb[0].mxu0 %v58
  %v752 = vpop.f32.mrb[0].mxu0
  %v753 = vadd.f32 0.0, %v752
  %v754 = vpop.f32.mrb[0].mxu0
  %v755 = vadd.f32 0.0, %v754
  %756 = vdwg.mxu0
  %v757 = vld [vmem:[%s2] sm:$0xff]
  %v758 = vld [vmem:[%s2 + $0x8] sm:$0xff]
  %v759 = vld [vmem:[%s2 + $0x10] sm:$0xf]
  %s760 = scalar_lea.vmem %s2, 24
  %v761 = vld [vmem:[%s760] sm:$0xff]
  %v762 = vld [vmem:[%s760 + $0x8] sm:$0xff]
  %v763 = vld [vmem:[%s760 + $0x10] sm:$0xf]
  %vm764 = vcmask 195584
  %v766 = vsel %vm764, %v761, 0
  %v769 = vsel %vm764, %v762, 0
  %v772 = vsel %vm764, %v763, 0
  %774 = vmatprep.subr.mxu0 %v328
  %775 = vmatpush1.msra.mxu0 %v326
  %776 = vmatprep.subr.mxu0 %v334
  %777 = vmatpush1.msra.mxu0 %v332
  %778 = vmatprep.subr.mxu0 %v340
  %779 = vmatpush1.msra.mxu0 %v338
  %780 = vmatprep.subr.mxu0 0.0
  %781 = vmatpush1.msra.mxu0 0.0
  %782 = vmatprep.subr.mxu0 0.0
  %783 = vmatpush1.msra.mxu0 0.0
  %784 = vmatprep.subr.mxu0 0.0
  %785 = vmatpush1.msra.mxu0 0.0
  %786 = vmatprep.subr.mxu0 0.0
  %787 = vmatpush1.msra.mxu0 0.0
  %788 = vmatprep.subr.mxu0 0.0
  %789 = vmatpush1.msra.mxu0 0.0
  %790 = vmatprep.subr.mxu0 0.0
  %791 = vmatpush1.msra.mxu0 0.0
  %792 = vmatprep.subr.mxu0 0.0
  %793 = vmatpush1.msra.mxu0 0.0
  %794 = vmatprep.subr.mxu0 0.0
  %795 = vmatpush1.msra.mxu0 0.0
  %796 = vmatprep.subr.mxu0 0.0
  %797 = vmatpush1.msra.mxu0 0.0
  %798 = vmatprep.subr.mxu0 0.0
  %799 = vmatpush1.msra.mxu0 0.0
  %800 = vmatprep.subr.mxu0 0.0
  %801 = vmatpush1.msra.mxu0 0.0
  %802 = vmatprep.subr.mxu0 0.0
  %803 = vmatpush1.msra.mxu0 0.0
  %804 = vmatprep.subr.mxu0 0.0
  %805 = vmatpush1.msra.mxu0 0.0
  %806 = vmatprep.subr.mxu0 0.0
  %807 = vmatpush1.msra.mxu0 0.0
  %808 = vmatprep.subr.mxu0 0.0
  %809 = vmatpush1.msra.mxu0 0.0
  %810 = vmatprep.subr.mxu0 0.0
  %811 = vmatpush1.msra.mxu0 0.0
  %812 = vmatprep.subr.mxu0 0.0
  %813 = vmatpush1.msra.mxu0 0.0
  %814 = vmatprep.subr.mxu0 0.0
  %815 = vmatpush1.msra.mxu0 0.0
  %816 = vmatprep.subr.mxu0 0.0
  %817 = vmatpush1.msra.mxu0 0.0
  %818 = vmatprep.subr.mxu0 0.0
  %819 = vmatpush1.msra.mxu0 0.0
  %820 = vmatprep.subr.mxu0 0.0
  %821 = vmatpush1.msra.mxu0 0.0
  %822 = vmatprep.subr.mxu0 0.0
  %823 = vmatpush1.msra.mxu0 0.0
  %824 = vmatprep.subr.mxu0 0.0
  %825 = vmatpush1.msra.mxu0 0.0
  %826 = vmatprep.subr.mxu0 0.0
  %827 = vmatpush1.msra.mxu0 0.0
  %828 = vmatprep.subr.mxu0 0.0
  %829 = vmatpush1.msra.mxu0 0.0
  %830 = vmatprep.subr.mxu0 0.0
  %831 = vmatpush1.msra.mxu0 0.0
  %832 = vmatprep.subr.mxu0 0.0
  %833 = vmatpush1.msra.mxu0 0.0
  %834 = vmatprep.subr.mxu0 0.0
  %835 = vmatpush1.msra.mxu0 0.0
  %836 = vmatprep.subr.mxu0 0.0
  %837 = vmatpush1.msra.mxu0 0.0
  %838 = vmatprep.mubr.f32.mxu0 0.0
  %839 = vmatmul.mubr.f32.gmra.mrb[0].mxu0 %v766
  %v840 = vpop.f32.mrb[0].mxu0
  %v841 = vadd.f32 0.0, %v840
  %v842 = vpop.f32.mrb[0].mxu0
  %v843 = vadd.f32 0.0, %v842
  %844 = vmatprep.mubr.f32.mxu0 0.0
  %845 = vmatmul.mubr.f32.gmra.mrb[0].mxu0 %v769
  %v846 = vpop.f32.mrb[0].mxu0
  %v847 = vadd.f32 0.0, %v846
  %v848 = vpop.f32.mrb[0].mxu0
  %v849 = vadd.f32 0.0, %v848
  %850 = vmatprep.mubr.f32.mxu0 0.0
  %851 = vmatmul.mubr.f32.gmra.mrb[0].mxu0 %v772
  %v852 = vpop.f32.mrb[0].mxu0
  %v853 = vadd.f32 0.0, %v852
  %v854 = vpop.f32.mrb[0].mxu0
  %v855 = vadd.f32 0.0, %v854
  %856 = vdwg.mxu0
  %857 = vmatprep.subr.mxu0 %v411
  %858 = vmatpush1.msra.mxu0 %v409
  %859 = vmatprep.subr.mxu0 %v417
  %860 = vmatpush1.msra.mxu0 %v415
  %861 = vmatprep.subr.mxu0 %v423
  %862 = vmatpush1.msra.mxu0 %v421
  %863 = vmatprep.subr.mxu0 0.0
  %864 = vmatpush1.msra.mxu0 0.0
  %865 = vmatprep.subr.mxu0 0.0
  %866 = vmatpush1.msra.mxu0 0.0
  %867 = vmatprep.subr.mxu0 0.0
  %868 = vmatpush1.msra.mxu0 0.0
  %869 = vmatprep.subr.mxu0 0.0
  %870 = vmatpush1.msra.mxu0 0.0
  %871 = vmatprep.subr.mxu0 0.0
  %872 = vmatpush1.msra.mxu0 0.0
  %873 = vmatprep.subr.mxu0 0.0
  %874 = vmatpush1.msra.mxu0 0.0
  %875 = vmatprep.subr.mxu0 0.0
  %876 = vmatpush1.msra.mxu0 0.0
  %877 = vmatprep.subr.mxu0 0.0
  %878 = vmatpush1.msra.mxu0 0.0
  %879 = vmatprep.subr.mxu0 0.0
  %880 = vmatpush1.msra.mxu0 0.0
  %881 = vmatprep.subr.mxu0 0.0
  %882 = vmatpush1.msra.mxu0 0.0
  %883 = vmatprep.subr.mxu0 0.0
  %884 = vmatpush1.msra.mxu0 0.0
  %885 = vmatprep.subr.mxu0 0.0
  %886 = vmatpush1.msra.mxu0 0.0
  %887 = vmatprep.subr.mxu0 0.0
  %888 = vmatpush1.msra.mxu0 0.0
  %889 = vmatprep.subr.mxu0 0.0
  %890 = vmatpush1.msra.mxu0 0.0
  %891 = vmatprep.subr.mxu0 0.0
  %892 = vmatpush1.msra.mxu0 0.0
  %893 = vmatprep.subr.mxu0 0.0
  %894 = vmatpush1.msra.mxu0 0.0
  %895 = vmatprep.subr.mxu0 0.0
  %896 = vmatpush1.msra.mxu0 0.0
  %897 = vmatprep.subr.mxu0 0.0
  %898 = vmatpush1.msra.mxu0 0.0
  %899 = vmatprep.subr.mxu0 0.0
  %900 = vmatpush1.msra.mxu0 0.0
  %901 = vmatprep.subr.mxu0 0.0
  %902 = vmatpush1.msra.mxu0 0.0
  %903 = vmatprep.subr.mxu0 0.0
  %904 = vmatpush1.msra.mxu0 0.0
  %905 = vmatprep.subr.mxu0 0.0
  %906 = vmatpush1.msra.mxu0 0.0
  %907 = vmatprep.subr.mxu0 0.0
  %908 = vmatpush1.msra.mxu0 0.0
  %909 = vmatprep.subr.mxu0 0.0
  %910 = vmatpush1.msra.mxu0 0.0
  %911 = vmatprep.subr.mxu0 0.0
  %912 = vmatpush1.msra.mxu0 0.0
  %913 = vmatprep.subr.mxu0 0.0
  %914 = vmatpush1.msra.mxu0 0.0
  %915 = vmatprep.subr.mxu0 0.0
  %916 = vmatpush1.msra.mxu0 0.0
  %917 = vmatprep.subr.mxu0 0.0
  %918 = vmatpush1.msra.mxu0 0.0
  %919 = vmatprep.subr.mxu0 0.0
  %920 = vmatpush1.msra.mxu0 0.0
  %921 = vmatprep.mubr.f32.mxu0 0.0
  %922 = vmatmul.mubr.f32.gmra.mrb[0].mxu0 %v766
  %v923 = vpop.f32.mrb[0].mxu0
  %v924 = vadd.f32 0.0, %v923
  %v925 = vpop.f32.mrb[0].mxu0
  %v926 = vadd.f32 0.0, %v925
  %927 = vmatprep.mubr.f32.mxu0 0.0
  %928 = vmatmul.mubr.f32.gmra.mrb[0].mxu0 %v769
  %v929 = vpop.f32.mrb[0].mxu0
  %v930 = vadd.f32 0.0, %v929
  %v931 = vpop.f32.mrb[0].mxu0
  %v932 = vadd.f32 0.0, %v931
  %933 = vmatprep.mubr.f32.mxu0 0.0
  %934 = vmatmul.mubr.f32.gmra.mrb[0].mxu0 %v772
  %v935 = vpop.f32.mrb[0].mxu0
  %v936 = vadd.f32 0.0, %v935
  %v937 = vpop.f32.mrb[0].mxu0
  %v938 = vadd.f32 0.0, %v937
  %939 = vdwg.mxu0
  %v941 = vsel %vm764, %v757, 0
  %v944 = vsel %vm764, %v758, 0
  %v947 = vsel %vm764, %v759, 0
  %949 = vmatprep.subr.mxu0 %v162
  %950 = vmatpush1.msra.mxu0 %v160
  %951 = vmatprep.subr.mxu0 %v168
  %952 = vmatpush1.msra.mxu0 %v166
  %953 = vmatprep.subr.mxu0 %v174
  %954 = vmatpush1.msra.mxu0 %v172
  %955 = vmatprep.subr.mxu0 0.0
  %956 = vmatpush1.msra.mxu0 0.0
  %957 = vmatprep.subr.mxu0 0.0
  %958 = vmatpush1.msra.mxu0 0.0
  %959 = vmatprep.subr.mxu0 0.0
  %960 = vmatpush1.msra.mxu0 0.0
  %961 = vmatprep.subr.mxu0 0.0
  %962 = vmatpush1.msra.mxu0 0.0
  %963 = vmatprep.subr.mxu0 0.0
  %964 = vmatpush1.msra.mxu0 0.0
  %965 = vmatprep.subr.mxu0 0.0
  %966 = vmatpush1.msra.mxu0 0.0
  %967 = vmatprep.subr.mxu0 0.0
  %968 = vmatpush1.msra.mxu0 0.0
  %969 = vmatprep.subr.mxu0 0.0
  %970 = vmatpush1.msra.mxu0 0.0
  %971 = vmatprep.subr.mxu0 0.0
  %972 = vmatpush1.msra.mxu0 0.0
  %973 = vmatprep.subr.mxu0 0.0
  %974 = vmatpush1.msra.mxu0 0.0
  %975 = vmatprep.subr.mxu0 0.0
  %976 = vmatpush1.msra.mxu0 0.0
  %977 = vmatprep.subr.mxu0 0.0
  %978 = vmatpush1.msra.mxu0 0.0
  %979 = vmatprep.subr.mxu0 0.0
  %980 = vmatpush1.msra.mxu0 0.0
  %981 = vmatprep.subr.mxu0 0.0
  %982 = vmatpush1.msra.mxu0 0.0
  %983 = vmatprep.subr.mxu0 0.0
  %984 = vmatpush1.msra.mxu0 0.0
  %985 = vmatprep.subr.mxu0 0.0
  %986 = vmatpush1.msra.mxu0 0.0
  %987 = vmatprep.subr.mxu0 0.0
  %988 = vmatpush1.msra.mxu0 0.0
  %989 = vmatprep.subr.mxu0 0.0
  %990 = vmatpush1.msra.mxu0 0.0
  %991 = vmatprep.subr.mxu0 0.0
  %992 = vmatpush1.msra.mxu0 0.0
  %993 = vmatprep.subr.mxu0 0.0
  %994 = vmatpush1.msra.mxu0 0.0
  %995 = vmatprep.subr.mxu0 0.0
  %996 = vmatpush1.msra.mxu0 0.0
  %997 = vmatprep.subr.mxu0 0.0
  %998 = vmatpush1.msra.mxu0 0.0
  %999 = vmatprep.subr.mxu0 0.0
  %1000 = vmatpush1.msra.mxu0 0.0
  %1001 = vmatprep.subr.mxu0 0.0
  %1002 = vmatpush1.msra.mxu0 0.0
  %1003 = vmatprep.subr.mxu0 0.0
  %1004 = vmatpush1.msra.mxu0 0.0
  %1005 = vmatprep.subr.mxu0 0.0
  %1006 = vmatpush1.msra.mxu0 0.0
  %1007 = vmatprep.subr.mxu0 0.0
  %1008 = vmatpush1.msra.mxu0 0.0
  %1009 = vmatprep.subr.mxu0 0.0
  %1010 = vmatpush1.msra.mxu0 0.0
  %1011 = vmatprep.subr.mxu0 0.0
  %1012 = vmatpush1.msra.mxu0 0.0
  %1013 = vmatprep.mubr.f32.mxu0 0.0
  %1014 = vmatmul.mubr.f32.gmra.mrb[0].mxu0 %v941
  %v1015 = vpop.f32.mrb[0].mxu0
  %v1016 = vadd.f32 %v841, %v1015
  %v1017 = vpop.f32.mrb[0].mxu0
  %v1018 = vadd.f32 %v843, %v1017
  %1019 = vmatprep.mubr.f32.mxu0 0.0
  %1020 = vmatmul.mubr.f32.gmra.mrb[0].mxu0 %v944
  %v1021 = vpop.f32.mrb[0].mxu0
  %v1022 = vadd.f32 %v847, %v1021
  %v1023 = vpop.f32.mrb[0].mxu0
  %v1024 = vadd.f32 %v849, %v1023
  %1025 = vmatprep.mubr.f32.mxu0 0.0
  %1026 = vmatmul.mubr.f32.gmra.mrb[0].mxu0 %v947
  %v1027 = vpop.f32.mrb[0].mxu0
  %v1028 = vadd.f32 %v853, %v1027
  %v1029 = vpop.f32.mrb[0].mxu0
  %v1030 = vadd.f32 %v855, %v1029
  %1031 = vdwg.mxu0
  %1032 = vmatprep.subr.mxu0 %v245
  %1033 = vmatpush1.msra.mxu0 %v243
  %1034 = vmatprep.subr.mxu0 %v251
  %1035 = vmatpush1.msra.mxu0 %v249
  %1036 = vmatprep.subr.mxu0 %v257
  %1037 = vmatpush1.msra.mxu0 %v255
  %1038 = vmatprep.subr.mxu0 0.0
  %1039 = vmatpush1.msra.mxu0 0.0
  %1040 = vmatprep.subr.mxu0 0.0
  %1041 = vmatpush1.msra.mxu0 0.0
  %1042 = vmatprep.subr.mxu0 0.0
  %1043 = vmatpush1.msra.mxu0 0.0
  %1044 = vmatprep.subr.mxu0 0.0
  %1045 = vmatpush1.msra.mxu0 0.0
  %1046 = vmatprep.subr.mxu0 0.0
  %1047 = vmatpush1.msra.mxu0 0.0
  %1048 = vmatprep.subr.mxu0 0.0
  %1049 = vmatpush1.msra.mxu0 0.0
  %1050 = vmatprep.subr.mxu0 0.0
  %1051 = vmatpush1.msra.mxu0 0.0
  %1052 = vmatprep.subr.mxu0 0.0
  %1053 = vmatpush1.msra.mxu0 0.0
  %1054 = vmatprep.subr.mxu0 0.0
  %1055 = vmatpush1.msra.mxu0 0.0
  %1056 = vmatprep.subr.mxu0 0.0
  %1057 = vmatpush1.msra.mxu0 0.0
  %1058 = vmatprep.subr.mxu0 0.0
  %1059 = vmatpush1.msra.mxu0 0.0
  %1060 = vmatprep.subr.mxu0 0.0
  %1061 = vmatpush1.msra.mxu0 0.0
  %1062 = vmatprep.subr.mxu0 0.0
  %1063 = vmatpush1.msra.mxu0 0.0
  %1064 = vmatprep.subr.mxu0 0.0
  %1065 = vmatpush1.msra.mxu0 0.0
  %1066 = vmatprep.subr.mxu0 0.0
  %1067 = vmatpush1.msra.mxu0 0.0
  %1068 = vmatprep.subr.mxu0 0.0
  %1069 = vmatpush1.msra.mxu0 0.0
  %1070 = vmatprep.subr.mxu0 0.0
  %1071 = vmatpush1.msra.mxu0 0.0
  %1072 = vmatprep.subr.mxu0 0.0
  %1073 = vmatpush1.msra.mxu0 0.0
  %1074 = vmatprep.subr.mxu0 0.0
  %1075 = vmatpush1.msra.mxu0 0.0
  %1076 = vmatprep.subr.mxu0 0.0
  %1077 = vmatpush1.msra.mxu0 0.0
  %1078 = vmatprep.subr.mxu0 0.0
  %1079 = vmatpush1.msra.mxu0 0.0
  %1080 = vmatprep.subr.mxu0 0.0
  %1081 = vmatpush1.msra.mxu0 0.0
  %1082 = vmatprep.subr.mxu0 0.0
  %1083 = vmatpush1.msra.mxu0 0.0
  %1084 = vmatprep.subr.mxu0 0.0
  %1085 = vmatpush1.msra.mxu0 0.0
  %1086 = vmatprep.subr.mxu0 0.0
  %1087 = vmatpush1.msra.mxu0 0.0
  %1088 = vmatprep.subr.mxu0 0.0
  %1089 = vmatpush1.msra.mxu0 0.0
  %1090 = vmatprep.subr.mxu0 0.0
  %1091 = vmatpush1.msra.mxu0 0.0
  %1092 = vmatprep.subr.mxu0 0.0
  %1093 = vmatpush1.msra.mxu0 0.0
  %1094 = vmatprep.subr.mxu0 0.0
  %1095 = vmatpush1.msra.mxu0 0.0
  %1096 = vmatprep.mubr.f32.mxu0 0.0
  %1097 = vmatmul.mubr.f32.gmra.mrb[0].mxu0 %v941
  %v1098 = vpop.f32.mrb[0].mxu0
  %v1099 = vadd.f32 %v924, %v1098
  %v1100 = vpop.f32.mrb[0].mxu0
  %v1101 = vadd.f32 %v926, %v1100
  %1102 = vmatprep.mubr.f32.mxu0 0.0
  %1103 = vmatmul.mubr.f32.gmra.mrb[0].mxu0 %v944
  %v1104 = vpop.f32.mrb[0].mxu0
  %v1105 = vadd.f32 %v930, %v1104
  %v1106 = vpop.f32.mrb[0].mxu0
  %v1107 = vadd.f32 %v932, %v1106
  %1108 = vmatprep.mubr.f32.mxu0 0.0
  %1109 = vmatmul.mubr.f32.gmra.mrb[0].mxu0 %v947
  %v1110 = vpop.f32.mrb[0].mxu0
  %v1111 = vadd.f32 %v936, %v1110
  %v1112 = vpop.f32.mrb[0].mxu0
  %v1113 = vadd.f32 %v938, %v1112
  %1114 = vdwg.mxu0
  %s1115 = scalar_lea.vmem %s2, 48
  %v1116 = vld [vmem:[%s1115] sm:$0xff]
  %v1117 = vld [vmem:[%s1115 + $0x8] sm:$0xff]
  %v1118 = vld [vmem:[%s1115 + $0x10] sm:$0xf]
  %v1120 = vsel %vm764, %v1116, 0
  %v1123 = vsel %vm764, %v1117, 0
  %v1126 = vsel %vm764, %v1118, 0
  %1128 = vmatprep.subr.mxu0 %v494
  %1129 = vmatpush1.msra.mxu0 %v492
  %1130 = vmatprep.subr.mxu0 %v500
  %1131 = vmatpush1.msra.mxu0 %v498
  %1132 = vmatprep.subr.mxu0 %v506
  %1133 = vmatpush1.msra.mxu0 %v504
  %1134 = vmatprep.subr.mxu0 0.0
  %1135 = vmatpush1.msra.mxu0 0.0
  %1136 = vmatprep.subr.mxu0 0.0
  %1137 = vmatpush1.msra.mxu0 0.0
  %1138 = vmatprep.subr.mxu0 0.0
  %1139 = vmatpush1.msra.mxu0 0.0
  %1140 = vmatprep.subr.mxu0 0.0
  %1141 = vmatpush1.msra.mxu0 0.0
  %1142 = vmatprep.subr.mxu0 0.0
  %1143 = vmatpush1.msra.mxu0 0.0
  %1144 = vmatprep.subr.mxu0 0.0
  %1145 = vmatpush1.msra.mxu0 0.0
  %1146 = vmatprep.subr.mxu0 0.0
  %1147 = vmatpush1.msra.mxu0 0.0
  %1148 = vmatprep.subr.mxu0 0.0
  %1149 = vmatpush1.msra.mxu0 0.0
  %1150 = vmatprep.subr.mxu0 0.0
  %1151 = vmatpush1.msra.mxu0 0.0
  %1152 = vmatprep.subr.mxu0 0.0
  %1153 = vmatpush1.msra.mxu0 0.0
  %1154 = vmatprep.subr.mxu0 0.0
  %1155 = vmatpush1.msra.mxu0 0.0
  %1156 = vmatprep.subr.mxu0 0.0
  %1157 = vmatpush1.msra.mxu0 0.0
  %1158 = vmatprep.subr.mxu0 0.0
  %1159 = vmatpush1.msra.mxu0 0.0
  %1160 = vmatprep.subr.mxu0 0.0
  %1161 = vmatpush1.msra.mxu0 0.0
  %1162 = vmatprep.subr.mxu0 0.0
  %1163 = vmatpush1.msra.mxu0 0.0
  %1164 = vmatprep.subr.mxu0 0.0
  %1165 = vmatpush1.msra.mxu0 0.0
  %1166 = vmatprep.subr.mxu0 0.0
  %1167 = vmatpush1.msra.mxu0 0.0
  %1168 = vmatprep.subr.mxu0 0.0
  %1169 = vmatpush1.msra.mxu0 0.0
  %1170 = vmatprep.subr.mxu0 0.0
  %1171 = vmatpush1.msra.mxu0 0.0
  %1172 = vmatprep.subr.mxu0 0.0
  %1173 = vmatpush1.msra.mxu0 0.0
  %1174 = vmatprep.subr.mxu0 0.0
  %1175 = vmatpush1.msra.mxu0 0.0
  %1176 = vmatprep.subr.mxu0 0.0
  %1177 = vmatpush1.msra.mxu0 0.0
  %1178 = vmatprep.subr.mxu0 0.0
  %1179 = vmatpush1.msra.mxu0 0.0
  %1180 = vmatprep.subr.mxu0 0.0
  %1181 = vmatpush1.msra.mxu0 0.0
  %1182 = vmatprep.subr.mxu0 0.0
  %1183 = vmatpush1.msra.mxu0 0.0
  %1184 = vmatprep.subr.mxu0 0.0
  %1185 = vmatpush1.msra.mxu0 0.0
  %1186 = vmatprep.subr.mxu0 0.0
  %1187 = vmatpush1.msra.mxu0 0.0
  %1188 = vmatprep.subr.mxu0 0.0
  %1189 = vmatpush1.msra.mxu0 0.0
  %1190 = vmatprep.subr.mxu0 0.0
  %1191 = vmatpush1.msra.mxu0 0.0
  %1192 = vmatprep.mubr.f32.mxu0 0.0
  %1193 = vmatmul.mubr.f32.gmra.mrb[0].mxu0 %v1120
  %v1194 = vpop.f32.mrb[0].mxu0
  %v1195 = vadd.f32 0.0, %v1194
  %v1196 = vpop.f32.mrb[0].mxu0
  %v1197 = vadd.f32 0.0, %v1196
  %1198 = vmatprep.mubr.f32.mxu0 0.0
  %1199 = vmatmul.mubr.f32.gmra.mrb[0].mxu0 %v1123
  %v1200 = vpop.f32.mrb[0].mxu0
  %v1201 = vadd.f32 0.0, %v1200
  %v1202 = vpop.f32.mrb[0].mxu0
  %v1203 = vadd.f32 0.0, %v1202
  %1204 = vmatprep.mubr.f32.mxu0 0.0
  %1205 = vmatmul.mubr.f32.gmra.mrb[0].mxu0 %v1126
  %v1206 = vpop.f32.mrb[0].mxu0
  %v1207 = vadd.f32 0.0, %v1206
  %v1208 = vpop.f32.mrb[0].mxu0
  %v1209 = vadd.f32 0.0, %v1208
  %1210 = vdwg.mxu0
  %1211 = vmatprep.subr.mxu0 %v577
  %1212 = vmatpush1.msra.mxu0 %v575
  %1213 = vmatprep.subr.mxu0 %v583
  %1214 = vmatpush1.msra.mxu0 %v581
  %1215 = vmatprep.subr.mxu0 %v589
  %1216 = vmatpush1.msra.mxu0 %v587
  %1217 = vmatprep.subr.mxu0 0.0
  %1218 = vmatpush1.msra.mxu0 0.0
  %1219 = vmatprep.subr.mxu0 0.0
  %1220 = vmatpush1.msra.mxu0 0.0
  %1221 = vmatprep.subr.mxu0 0.0
  %1222 = vmatpush1.msra.mxu0 0.0
  %1223 = vmatprep.subr.mxu0 0.0
  %1224 = vmatpush1.msra.mxu0 0.0
  %1225 = vmatprep.subr.mxu0 0.0
  %1226 = vmatpush1.msra.mxu0 0.0
  %1227 = vmatprep.subr.mxu0 0.0
  %1228 = vmatpush1.msra.mxu0 0.0
  %1229 = vmatprep.subr.mxu0 0.0
  %1230 = vmatpush1.msra.mxu0 0.0
  %1231 = vmatprep.subr.mxu0 0.0
  %1232 = vmatpush1.msra.mxu0 0.0
  %1233 = vmatprep.subr.mxu0 0.0
  %1234 = vmatpush1.msra.mxu0 0.0
  %1235 = vmatprep.subr.mxu0 0.0
  %1236 = vmatpush1.msra.mxu0 0.0
  %1237 = vmatprep.subr.mxu0 0.0
  %1238 = vmatpush1.msra.mxu0 0.0
  %1239 = vmatprep.subr.mxu0 0.0
  %1240 = vmatpush1.msra.mxu0 0.0
  %1241 = vmatprep.subr.mxu0 0.0
  %1242 = vmatpush1.msra.mxu0 0.0
  %1243 = vmatprep.subr.mxu0 0.0
  %1244 = vmatpush1.msra.mxu0 0.0
  %1245 = vmatprep.subr.mxu0 0.0
  %1246 = vmatpush1.msra.mxu0 0.0
  %1247 = vmatprep.subr.mxu0 0.0
  %1248 = vmatpush1.msra.mxu0 0.0
  %1249 = vmatprep.subr.mxu0 0.0
  %1250 = vmatpush1.msra.mxu0 0.0
  %1251 = vmatprep.subr.mxu0 0.0
  %1252 = vmatpush1.msra.mxu0 0.0
  %1253 = vmatprep.subr.mxu0 0.0
  %1254 = vmatpush1.msra.mxu0 0.0
  %1255 = vmatprep.subr.mxu0 0.0
  %1256 = vmatpush1.msra.mxu0 0.0
  %1257 = vmatprep.subr.mxu0 0.0
  %1258 = vmatpush1.msra.mxu0 0.0
  %1259 = vmatprep.subr.mxu0 0.0
  %1260 = vmatpush1.msra.mxu0 0.0
  %1261 = vmatprep.subr.mxu0 0.0
  %1262 = vmatpush1.msra.mxu0 0.0
  %1263 = vmatprep.subr.mxu0 0.0
  %1264 = vmatpush1.msra.mxu0 0.0
  %1265 = vmatprep.subr.mxu0 0.0
  %1266 = vmatpush1.msra.mxu0 0.0
  %1267 = vmatprep.subr.mxu0 0.0
  %1268 = vmatpush1.msra.mxu0 0.0
  %1269 = vmatprep.subr.mxu0 0.0
  %1270 = vmatpush1.msra.mxu0 0.0
  %1271 = vmatprep.subr.mxu0 0.0
  %1272 = vmatpush1.msra.mxu0 0.0
  %1273 = vmatprep.subr.mxu0 0.0
  %1274 = vmatpush1.msra.mxu0 0.0
  %1275 = vmatprep.mubr.f32.mxu0 0.0
  %1276 = vmatmul.mubr.f32.gmra.mrb[0].mxu0 %v1120
  %v1277 = vpop.f32.mrb[0].mxu0
  %v1278 = vadd.f32 0.0, %v1277
  %v1279 = vpop.f32.mrb[0].mxu0
  %v1280 = vadd.f32 0.0, %v1279
  %1281 = vmatprep.mubr.f32.mxu0 0.0
  %1282 = vmatmul.mubr.f32.gmra.mrb[0].mxu0 %v1123
  %v1283 = vpop.f32.mrb[0].mxu0
  %v1284 = vadd.f32 0.0, %v1283
  %v1285 = vpop.f32.mrb[0].mxu0
  %v1286 = vadd.f32 0.0, %v1285
  %1287 = vmatprep.mubr.f32.mxu0 0.0
  %1288 = vmatmul.mubr.f32.gmra.mrb[0].mxu0 %v1126
  %v1289 = vpop.f32.mrb[0].mxu0
  %v1290 = vadd.f32 0.0, %v1289
  %v1291 = vpop.f32.mrb[0].mxu0
  %v1292 = vadd.f32 0.0, %v1291
  %1293 = vdwg.mxu0
  %v1294 = vadd.f32 %v1016, %v1195
  %v1295 = vadd.f32 %v1018, %v1197
  %v1296 = vadd.f32 %v1099, %v1278
  %v1297 = vadd.f32 %v1101, %v1280
  %v1298 = vadd.f32 %v1022, %v1201
  %v1299 = vadd.f32 %v1024, %v1203
  %v1300 = vadd.f32 %v1105, %v1284
  %v1301 = vadd.f32 %v1107, %v1286
  %v1302 = vadd.f32 %v1028, %v1207
  %v1303 = vadd.f32 %v1030, %v1209
  %v1304 = vadd.f32 %v1111, %v1290
  %v1305 = vadd.f32 %v1113, %v1292
  %s1306 = scalar_lea.vmem %s2, 72
  %v1307 = vld [vmem:[%s1306] sm:$0xff]
  %v1308 = vld [vmem:[%s1306 + $0x8] sm:$0xff]
  %v1309 = vld [vmem:[%s1306 + $0x10] sm:$0xf]
  %v1311 = vsel %vm764, %v1307, 0
  %v1314 = vsel %vm764, %v1308, 0
  %v1317 = vsel %vm764, %v1309, 0
  %1319 = vmatprep.subr.mxu0 %v660
  %1320 = vmatpush1.msra.mxu0 %v658
  %1321 = vmatprep.subr.mxu0 %v666
  %1322 = vmatpush1.msra.mxu0 %v664
  %1323 = vmatprep.subr.mxu0 %v672
  %1324 = vmatpush1.msra.mxu0 %v670
  %1325 = vmatprep.subr.mxu0 0.0
  %1326 = vmatpush1.msra.mxu0 0.0
  %1327 = vmatprep.subr.mxu0 0.0
  %1328 = vmatpush1.msra.mxu0 0.0
  %1329 = vmatprep.subr.mxu0 0.0
  %1330 = vmatpush1.msra.mxu0 0.0
  %1331 = vmatprep.subr.mxu0 0.0
  %1332 = vmatpush1.msra.mxu0 0.0
  %1333 = vmatprep.subr.mxu0 0.0
  %1334 = vmatpush1.msra.mxu0 0.0
  %1335 = vmatprep.subr.mxu0 0.0
  %1336 = vmatpush1.msra.mxu0 0.0
  %1337 = vmatprep.subr.mxu0 0.0
  %1338 = vmatpush1.msra.mxu0 0.0
  %1339 = vmatprep.subr.mxu0 0.0
  %1340 = vmatpush1.msra.mxu0 0.0
  %1341 = vmatprep.subr.mxu0 0.0
  %1342 = vmatpush1.msra.mxu0 0.0
  %1343 = vmatprep.subr.mxu0 0.0
  %1344 = vmatpush1.msra.mxu0 0.0
  %1345 = vmatprep.subr.mxu0 0.0
  %1346 = vmatpush1.msra.mxu0 0.0
  %1347 = vmatprep.subr.mxu0 0.0
  %1348 = vmatpush1.msra.mxu0 0.0
  %1349 = vmatprep.subr.mxu0 0.0
  %1350 = vmatpush1.msra.mxu0 0.0
  %1351 = vmatprep.subr.mxu0 0.0
  %1352 = vmatpush1.msra.mxu0 0.0
  %1353 = vmatprep.subr.mxu0 0.0
  %1354 = vmatpush1.msra.mxu0 0.0
  %1355 = vmatprep.subr.mxu0 0.0
  %1356 = vmatpush1.msra.mxu0 0.0
  %1357 = vmatprep.subr.mxu0 0.0
  %1358 = vmatpush1.msra.mxu0 0.0
  %1359 = vmatprep.subr.mxu0 0.0
  %1360 = vmatpush1.msra.mxu0 0.0
  %1361 = vmatprep.subr.mxu0 0.0
  %1362 = vmatpush1.msra.mxu0 0.0
  %1363 = vmatprep.subr.mxu0 0.0
  %1364 = vmatpush1.msra.mxu0 0.0
  %1365 = vmatprep.subr.mxu0 0.0
  %1366 = vmatpush1.msra.mxu0 0.0
  %1367 = vmatprep.subr.mxu0 0.0
  %1368 = vmatpush1.msra.mxu0 0.0
  %1369 = vmatprep.subr.mxu0 0.0
  %1370 = vmatpush1.msra.mxu0 0.0
  %1371 = vmatprep.subr.mxu0 0.0
  %1372 = vmatpush1.msra.mxu0 0.0
  %1373 = vmatprep.subr.mxu0 0.0
  %1374 = vmatpush1.msra.mxu0 0.0
  %1375 = vmatprep.subr.mxu0 0.0
  %1376 = vmatpush1.msra.mxu0 0.0
  %1377 = vmatprep.subr.mxu0 0.0
  %1378 = vmatpush1.msra.mxu0 0.0
  %1379 = vmatprep.subr.mxu0 0.0
  %1380 = vmatpush1.msra.mxu0 0.0
  %1381 = vmatprep.subr.mxu0 0.0
  %1382 = vmatpush1.msra.mxu0 0.0
  %1383 = vmatprep.mubr.f32.mxu0 0.0
  %1384 = vmatmul.mubr.f32.gmra.mrb[0].mxu0 %v1311
  %v1385 = vpop.f32.mrb[0].mxu0
  %v1386 = vadd.f32 0.0, %v1385
  %v1387 = vpop.f32.mrb[0].mxu0
  %v1388 = vadd.f32 0.0, %v1387
  %1389 = vmatprep.mubr.f32.mxu0 0.0
  %1390 = vmatmul.mubr.f32.gmra.mrb[0].mxu0 %v1314
  %v1391 = vpop.f32.mrb[0].mxu0
  %v1392 = vadd.f32 0.0, %v1391
  %v1393 = vpop.f32.mrb[0].mxu0
  %v1394 = vadd.f32 0.0, %v1393
  %1395 = vmatprep.mubr.f32.mxu0 0.0
  %1396 = vmatmul.mubr.f32.gmra.mrb[0].mxu0 %v1317
  %v1397 = vpop.f32.mrb[0].mxu0
  %v1398 = vadd.f32 0.0, %v1397
  %v1399 = vpop.f32.mrb[0].mxu0
  %v1400 = vadd.f32 0.0, %v1399
  %1401 = vdwg.mxu0
  %1402 = vmatprep.subr.mxu0 %v743
  %1403 = vmatpush1.msra.mxu0 %v741
  %1404 = vmatprep.subr.mxu0 %v749
  %1405 = vmatpush1.msra.mxu0 %v747
  %1406 = vmatprep.subr.mxu0 %v755
  %1407 = vmatpush1.msra.mxu0 %v753
  %1408 = vmatprep.subr.mxu0 0.0
  %1409 = vmatpush1.msra.mxu0 0.0
  %1410 = vmatprep.subr.mxu0 0.0
  %1411 = vmatpush1.msra.mxu0 0.0
  %1412 = vmatprep.subr.mxu0 0.0
  %1413 = vmatpush1.msra.mxu0 0.0
  %1414 = vmatprep.subr.mxu0 0.0
  %1415 = vmatpush1.msra.mxu0 0.0
  %1416 = vmatprep.subr.mxu0 0.0
  %1417 = vmatpush1.msra.mxu0 0.0
  %1418 = vmatprep.subr.mxu0 0.0
  %1419 = vmatpush1.msra.mxu0 0.0
  %1420 = vmatprep.subr.mxu0 0.0
  %1421 = vmatpush1.msra.mxu0 0.0
  %1422 = vmatprep.subr.mxu0 0.0
  %1423 = vmatpush1.msra.mxu0 0.0
  %1424 = vmatprep.subr.mxu0 0.0
  %1425 = vmatpush1.msra.mxu0 0.0
  %1426 = vmatprep.subr.mxu0 0.0
  %1427 = vmatpush1.msra.mxu0 0.0
  %1428 = vmatprep.subr.mxu0 0.0
  %1429 = vmatpush1.msra.mxu0 0.0
  %1430 = vmatprep.subr.mxu0 0.0
  %1431 = vmatpush1.msra.mxu0 0.0
  %1432 = vmatprep.subr.mxu0 0.0
  %1433 = vmatpush1.msra.mxu0 0.0
  %1434 = vmatprep.subr.mxu0 0.0
  %1435 = vmatpush1.msra.mxu0 0.0
  %1436 = vmatprep.subr.mxu0 0.0
  %1437 = vmatpush1.msra.mxu0 0.0
  %1438 = vmatprep.subr.mxu0 0.0
  %1439 = vmatpush1.msra.mxu0 0.0
  %1440 = vmatprep.subr.mxu0 0.0
  %1441 = vmatpush1.msra.mxu0 0.0
  %1442 = vmatprep.subr.mxu0 0.0
  %1443 = vmatpush1.msra.mxu0 0.0
  %1444 = vmatprep.subr.mxu0 0.0
  %1445 = vmatpush1.msra.mxu0 0.0
  %1446 = vmatprep.subr.mxu0 0.0
  %1447 = vmatpush1.msra.mxu0 0.0
  %1448 = vmatprep.subr.mxu0 0.0
  %1449 = vmatpush1.msra.mxu0 0.0
  %1450 = vmatprep.subr.mxu0 0.0
  %1451 = vmatpush1.msra.mxu0 0.0
  %1452 = vmatprep.subr.mxu0 0.0
  %1453 = vmatpush1.msra.mxu0 0.0
  %1454 = vmatprep.subr.mxu0 0.0
  %1455 = vmatpush1.msra.mxu0 0.0
  %1456 = vmatprep.subr.mxu0 0.0
  %1457 = vmatpush1.msra.mxu0 0.0
  %1458 = vmatprep.subr.mxu0 0.0
  %1459 = vmatpush1.msra.mxu0 0.0
  %1460 = vmatprep.subr.mxu0 0.0
  %1461 = vmatpush1.msra.mxu0 0.0
  %1462 = vmatprep.subr.mxu0 0.0
  %1463 = vmatpush1.msra.mxu0 0.0
  %1464 = vmatprep.subr.mxu0 0.0
  %1465 = vmatpush1.msra.mxu0 0.0
  %1466 = vmatprep.mubr.f32.mxu0 0.0
  %1467 = vmatmul.mubr.f32.gmra.mrb[0].mxu0 %v1311
  %v1468 = vpop.f32.mrb[0].mxu0
  %v1469 = vadd.f32 0.0, %v1468
  %v1470 = vpop.f32.mrb[0].mxu0
  %v1471 = vadd.f32 0.0, %v1470
  %1472 = vmatprep.mubr.f32.mxu0 0.0
  %1473 = vmatmul.mubr.f32.gmra.mrb[0].mxu0 %v1314
  %v1474 = vpop.f32.mrb[0].mxu0
  %v1475 = vadd.f32 0.0, %v1474
  %v1476 = vpop.f32.mrb[0].mxu0
  %v1477 = vadd.f32 0.0, %v1476
  %1478 = vmatprep.mubr.f32.mxu0 0.0
  %1479 = vmatmul.mubr.f32.gmra.mrb[0].mxu0 %v1317
  %v1480 = vpop.f32.mrb[0].mxu0
  %v1481 = vadd.f32 0.0, %v1480
  %v1482 = vpop.f32.mrb[0].mxu0
  %v1483 = vadd.f32 0.0, %v1482
  %1484 = vdwg.mxu0
  %v1485 = vadd.f32 %v1294, %v1386
  %v1486 = vadd.f32 %v1295, %v1388
  %v1487 = vadd.f32 %v1296, %v1469
  %v1488 = vadd.f32 %v1297, %v1471
  %v1489 = vadd.f32 %v1298, %v1392
  %v1490 = vadd.f32 %v1299, %v1394
  %v1491 = vadd.f32 %v1300, %v1475
  %v1492 = vadd.f32 %v1301, %v1477
  %v1493 = vadd.f32 %v1302, %v1398
  %v1494 = vadd.f32 %v1303, %v1400
  %v1495 = vadd.f32 %v1304, %v1481
  %v1496 = vadd.f32 %v1305, %v1483
  %v1497 = vld [vmem:[%s3] sm:$0xff]
  %v1498 = vld [vmem:[%s3 + $0x8] sm:$0xff]
  %s1499 = scalar_lea.vmem %s3, 16
  %v1500 = vld [vmem:[%s1499] sm:$0xff]
  %v1501 = vld [vmem:[%s1499 + $0x8] sm:$0xff]
  %vm1502 = vcmask 162816
  %v1504 = vsel %vm1502, %v1500, 0
  %v1507 = vsel %vm1502, %v1501, 0
  %v1510 = vsel %vm60, %v1494, 0
  %1512 = vmatprep.subr.mxu0 0.0
  %1513 = vmatpush1.msra.mxu0 %v1486
  %1514 = vmatprep.subr.mxu0 0.0
  %1515 = vmatpush1.msra.mxu0 %v1490
  %1516 = vmatprep.subr.mxu0 0.0
  %1517 = vmatpush1.msra.mxu0 %v1510
  %1518 = vmatprep.subr.mxu0 0.0
  %1519 = vmatpush1.msra.mxu0 0.0
  %1520 = vmatprep.subr.mxu0 0.0
  %1521 = vmatpush1.msra.mxu0 0.0
  %1522 = vmatprep.subr.mxu0 0.0
  %1523 = vmatpush1.msra.mxu0 0.0
  %1524 = vmatprep.subr.mxu0 0.0
  %1525 = vmatpush1.msra.mxu0 0.0
  %1526 = vmatprep.subr.mxu0 0.0
  %1527 = vmatpush1.msra.mxu0 0.0
  %1528 = vmatprep.subr.mxu0 0.0
  %1529 = vmatpush1.msra.mxu0 0.0
  %1530 = vmatprep.subr.mxu0 0.0
  %1531 = vmatpush1.msra.mxu0 0.0
  %1532 = vmatprep.subr.mxu0 0.0
  %1533 = vmatpush1.msra.mxu0 0.0
  %1534 = vmatprep.subr.mxu0 0.0
  %1535 = vmatpush1.msra.mxu0 0.0
  %1536 = vmatprep.subr.mxu0 0.0
  %1537 = vmatpush1.msra.mxu0 0.0
  %1538 = vmatprep.subr.mxu0 0.0
  %1539 = vmatpush1.msra.mxu0 0.0
  %1540 = vmatprep.subr.mxu0 0.0
  %1541 = vmatpush1.msra.mxu0 0.0
  %1542 = vmatprep.subr.mxu0 0.0
  %1543 = vmatpush1.msra.mxu0 0.0
  %1544 = vmatprep.subr.mxu0 0.0
  %1545 = vmatpush1.msra.mxu0 0.0
  %1546 = vmatprep.subr.mxu0 0.0
  %1547 = vmatpush1.msra.mxu0 0.0
  %1548 = vmatprep.subr.mxu0 0.0
  %1549 = vmatpush1.msra.mxu0 0.0
  %1550 = vmatprep.subr.mxu0 0.0
  %1551 = vmatpush1.msra.mxu0 0.0
  %1552 = vmatprep.subr.mxu0 0.0
  %1553 = vmatpush1.msra.mxu0 0.0
  %1554 = vmatprep.subr.mxu0 0.0
  %1555 = vmatpush1.msra.mxu0 0.0
  %1556 = vmatprep.subr.mxu0 0.0
  %1557 = vmatpush1.msra.mxu0 0.0
  %1558 = vmatprep.subr.mxu0 0.0
  %1559 = vmatpush1.msra.mxu0 0.0
  %1560 = vmatprep.subr.mxu0 0.0
  %1561 = vmatpush1.msra.mxu0 0.0
  %1562 = vmatprep.subr.mxu0 0.0
  %1563 = vmatpush1.msra.mxu0 0.0
  %1564 = vmatprep.subr.mxu0 0.0
  %1565 = vmatpush1.msra.mxu0 0.0
  %1566 = vmatprep.subr.mxu0 0.0
  %1567 = vmatpush1.msra.mxu0 0.0
  %1568 = vmatprep.subr.mxu0 0.0
  %1569 = vmatpush1.msra.mxu0 0.0
  %1570 = vmatprep.subr.mxu0 0.0
  %1571 = vmatpush1.msra.mxu0 0.0
  %1572 = vmatprep.subr.mxu0 0.0
  %1573 = vmatpush1.msra.mxu0 0.0
  %1574 = vmatprep.subr.mxu0 0.0
  %1575 = vmatpush1.msra.mxu0 0.0
  %1576 = vmatprep.mubr.f32.mxu0 0.0
  %1577 = vmatmul.mubr.f32.gmra.mrb[0].mxu0 %v1504
  %v1578 = vpop.f32.mrb[0].mxu0
  %v1579 = vadd.f32 0.0, %v1578
  %v1580 = vpop.f32.mrb[0].mxu0
  %1581 = vmatprep.mubr.f32.mxu0 0.0
  %1582 = vmatmul.mubr.f32.gmra.mrb[0].mxu0 %v1507
  %v1583 = vpop.f32.mrb[0].mxu0
  %v1584 = vadd.f32 0.0, %v1583
  %v1585 = vpop.f32.mrb[0].mxu0
  %1586 = vdwg.mxu0
  %v1588 = vsel %vm1502, %v1497, 0
  %v1591 = vsel %vm1502, %v1498, 0
  %v1594 = vsel %vm60, %v1493, 0
  %1596 = vmatprep.subr.mxu0 0.0
  %1597 = vmatpush1.msra.mxu0 %v1485
  %1598 = vmatprep.subr.mxu0 0.0
  %1599 = vmatpush1.msra.mxu0 %v1489
  %1600 = vmatprep.subr.mxu0 0.0
  %1601 = vmatpush1.msra.mxu0 %v1594
  %1602 = vmatprep.subr.mxu0 0.0
  %1603 = vmatpush1.msra.mxu0 0.0
  %1604 = vmatprep.subr.mxu0 0.0
  %1605 = vmatpush1.msra.mxu0 0.0
  %1606 = vmatprep.subr.mxu0 0.0
  %1607 = vmatpush1.msra.mxu0 0.0
  %1608 = vmatprep.subr.mxu0 0.0
  %1609 = vmatpush1.msra.mxu0 0.0
  %1610 = vmatprep.subr.mxu0 0.0
  %1611 = vmatpush1.msra.mxu0 0.0
  %1612 = vmatprep.subr.mxu0 0.0
  %1613 = vmatpush1.msra.mxu0 0.0
  %1614 = vmatprep.subr.mxu0 0.0
  %1615 = vmatpush1.msra.mxu0 0.0
  %1616 = vmatprep.subr.mxu0 0.0
  %1617 = vmatpush1.msra.mxu0 0.0
  %1618 = vmatprep.subr.mxu0 0.0
  %1619 = vmatpush1.msra.mxu0 0.0
  %1620 = vmatprep.subr.mxu0 0.0
  %1621 = vmatpush1.msra.mxu0 0.0
  %1622 = vmatprep.subr.mxu0 0.0
  %1623 = vmatpush1.msra.mxu0 0.0
  %1624 = vmatprep.subr.mxu0 0.0
  %1625 = vmatpush1.msra.mxu0 0.0
  %1626 = vmatprep.subr.mxu0 0.0
  %1627 = vmatpush1.msra.mxu0 0.0
  %1628 = vmatprep.subr.mxu0 0.0
  %1629 = vmatpush1.msra.mxu0 0.0
  %1630 = vmatprep.subr.mxu0 0.0
  %1631 = vmatpush1.msra.mxu0 0.0
  %1632 = vmatprep.subr.mxu0 0.0
  %1633 = vmatpush1.msra.mxu0 0.0
  %1634 = vmatprep.subr.mxu0 0.0
  %1635 = vmatpush1.msra.mxu0 0.0
  %1636 = vmatprep.subr.mxu0 0.0
  %1637 = vmatpush1.msra.mxu0 0.0
  %1638 = vmatprep.subr.mxu0 0.0
  %1639 = vmatpush1.msra.mxu0 0.0
  %1640 = vmatprep.subr.mxu0 0.0
  %1641 = vmatpush1.msra.mxu0 0.0
  %1642 = vmatprep.subr.mxu0 0.0
  %1643 = vmatpush1.msra.mxu0 0.0
  %1644 = vmatprep.subr.mxu0 0.0
  %1645 = vmatpush1.msra.mxu0 0.0
  %1646 = vmatprep.subr.mxu0 0.0
  %1647 = vmatpush1.msra.mxu0 0.0
  %1648 = vmatprep.subr.mxu0 0.0
  %1649 = vmatpush1.msra.mxu0 0.0
  %1650 = vmatprep.subr.mxu0 0.0
  %1651 = vmatpush1.msra.mxu0 0.0
  %1652 = vmatprep.subr.mxu0 0.0
  %1653 = vmatpush1.msra.mxu0 0.0
  %1654 = vmatprep.subr.mxu0 0.0
  %1655 = vmatpush1.msra.mxu0 0.0
  %1656 = vmatprep.subr.mxu0 0.0
  %1657 = vmatpush1.msra.mxu0 0.0
  %1658 = vmatprep.subr.mxu0 0.0
  %1659 = vmatpush1.msra.mxu0 0.0
  %1660 = vmatprep.mubr.f32.mxu0 0.0
  %1661 = vmatmul.mubr.f32.gmra.mrb[0].mxu0 %v1588
  %v1662 = vpop.f32.mrb[0].mxu0
  %v1663 = vadd.f32 %v1579, %v1662
  %v1664 = vpop.f32.mrb[0].mxu0
  %1665 = vmatprep.mubr.f32.mxu0 0.0
  %1666 = vmatmul.mubr.f32.gmra.mrb[0].mxu0 %v1591
  %v1667 = vpop.f32.mrb[0].mxu0
  %v1668 = vadd.f32 %v1584, %v1667
  %v1669 = vpop.f32.mrb[0].mxu0
  %1670 = vdwg.mxu0
  %s1671 = scalar_lea.vmem %s3, 32
  %v1672 = vld [vmem:[%s1671] sm:$0xff]
  %v1673 = vld [vmem:[%s1671 + $0x8] sm:$0xff]
  %v1675 = vsel %vm1502, %v1672, 0
  %v1678 = vsel %vm1502, %v1673, 0
  %v1681 = vsel %vm60, %v1495, 0
  %1683 = vmatprep.subr.mxu0 0.0
  %1684 = vmatpush1.msra.mxu0 %v1487
  %1685 = vmatprep.subr.mxu0 0.0
  %1686 = vmatpush1.msra.mxu0 %v1491
  %1687 = vmatprep.subr.mxu0 0.0
  %1688 = vmatpush1.msra.mxu0 %v1681
  %1689 = vmatprep.subr.mxu0 0.0
  %1690 = vmatpush1.msra.mxu0 0.0
  %1691 = vmatprep.subr.mxu0 0.0
  %1692 = vmatpush1.msra.mxu0 0.0
  %1693 = vmatprep.subr.mxu0 0.0
  %1694 = vmatpush1.msra.mxu0 0.0
  %1695 = vmatprep.subr.mxu0 0.0
  %1696 = vmatpush1.msra.mxu0 0.0
  %1697 = vmatprep.subr.mxu0 0.0
  %1698 = vmatpush1.msra.mxu0 0.0
  %1699 = vmatprep.subr.mxu0 0.0
  %1700 = vmatpush1.msra.mxu0 0.0
  %1701 = vmatprep.subr.mxu0 0.0
  %1702 = vmatpush1.msra.mxu0 0.0
  %1703 = vmatprep.subr.mxu0 0.0
  %1704 = vmatpush1.msra.mxu0 0.0
  %1705 = vmatprep.subr.mxu0 0.0
  %1706 = vmatpush1.msra.mxu0 0.0
  %1707 = vmatprep.subr.mxu0 0.0
  %1708 = vmatpush1.msra.mxu0 0.0
  %1709 = vmatprep.subr.mxu0 0.0
  %1710 = vmatpush1.msra.mxu0 0.0
  %1711 = vmatprep.subr.mxu0 0.0
  %1712 = vmatpush1.msra.mxu0 0.0
  %1713 = vmatprep.subr.mxu0 0.0
  %1714 = vmatpush1.msra.mxu0 0.0
  %1715 = vmatprep.subr.mxu0 0.0
  %1716 = vmatpush1.msra.mxu0 0.0
  %1717 = vmatprep.subr.mxu0 0.0
  %1718 = vmatpush1.msra.mxu0 0.0
  %1719 = vmatprep.subr.mxu0 0.0
  %1720 = vmatpush1.msra.mxu0 0.0
  %1721 = vmatprep.subr.mxu0 0.0
  %1722 = vmatpush1.msra.mxu0 0.0
  %1723 = vmatprep.subr.mxu0 0.0
  %1724 = vmatpush1.msra.mxu0 0.0
  %1725 = vmatprep.subr.mxu0 0.0
  %1726 = vmatpush1.msra.mxu0 0.0
  %1727 = vmatprep.subr.mxu0 0.0
  %1728 = vmatpush1.msra.mxu0 0.0
  %1729 = vmatprep.subr.mxu0 0.0
  %1730 = vmatpush1.msra.mxu0 0.0
  %1731 = vmatprep.subr.mxu0 0.0
  %1732 = vmatpush1.msra.mxu0 0.0
  %1733 = vmatprep.subr.mxu0 0.0
  %1734 = vmatpush1.msra.mxu0 0.0
  %1735 = vmatprep.subr.mxu0 0.0
  %1736 = vmatpush1.msra.mxu0 0.0
  %1737 = vmatprep.subr.mxu0 0.0
  %1738 = vmatpush1.msra.mxu0 0.0
  %1739 = vmatprep.subr.mxu0 0.0
  %1740 = vmatpush1.msra.mxu0 0.0
  %1741 = vmatprep.subr.mxu0 0.0
  %1742 = vmatpush1.msra.mxu0 0.0
  %1743 = vmatprep.subr.mxu0 0.0
  %1744 = vmatpush1.msra.mxu0 0.0
  %1745 = vmatprep.subr.mxu0 0.0
  %1746 = vmatpush1.msra.mxu0 0.0
  %1747 = vmatprep.mubr.f32.mxu0 0.0
  %1748 = vmatmul.mubr.f32.gmra.mrb[0].mxu0 %v1675
  %v1749 = vpop.f32.mrb[0].mxu0
  %v1750 = vadd.f32 0.0, %v1749
  %v1751 = vpop.f32.mrb[0].mxu0
  %1752 = vmatprep.mubr.f32.mxu0 0.0
  %1753 = vmatmul.mubr.f32.gmra.mrb[0].mxu0 %v1678
  %v1754 = vpop.f32.mrb[0].mxu0
  %v1755 = vadd.f32 0.0, %v1754
  %v1756 = vpop.f32.mrb[0].mxu0
  %1757 = vdwg.mxu0
  %v1758 = vadd.f32 %v1663, %v1750
  %v1759 = vadd.f32 %v1668, %v1755
  %s1760 = scalar_lea.vmem %s3, 48
  %v1761 = vld [vmem:[%s1760] sm:$0xff]
  %v1762 = vld [vmem:[%s1760 + $0x8] sm:$0xff]
  %v1764 = vsel %vm1502, %v1761, 0
  %v1767 = vsel %vm1502, %v1762, 0
  %v1770 = vsel %vm60, %v1496, 0
  %1772 = vmatprep.subr.mxu0 0.0
  %1773 = vmatpush1.msra.mxu0 %v1488
  %1774 = vmatprep.subr.mxu0 0.0
  %1775 = vmatpush1.msra.mxu0 %v1492
  %1776 = vmatprep.subr.mxu0 0.0
  %1777 = vmatpush1.msra.mxu0 %v1770
  %1778 = vmatprep.subr.mxu0 0.0
  %1779 = vmatpush1.msra.mxu0 0.0
  %1780 = vmatprep.subr.mxu0 0.0
  %1781 = vmatpush1.msra.mxu0 0.0
  %1782 = vmatprep.subr.mxu0 0.0
  %1783 = vmatpush1.msra.mxu0 0.0
  %1784 = vmatprep.subr.mxu0 0.0
  %1785 = vmatpush1.msra.mxu0 0.0
  %1786 = vmatprep.subr.mxu0 0.0
  %1787 = vmatpush1.msra.mxu0 0.0
  %1788 = vmatprep.subr.mxu0 0.0
  %1789 = vmatpush1.msra.mxu0 0.0
  %1790 = vmatprep.subr.mxu0 0.0
  %1791 = vmatpush1.msra.mxu0 0.0
  %1792 = vmatprep.subr.mxu0 0.0
  %1793 = vmatpush1.msra.mxu0 0.0
  %1794 = vmatprep.subr.mxu0 0.0
  %1795 = vmatpush1.msra.mxu0 0.0
  %1796 = vmatprep.subr.mxu0 0.0
  %1797 = vmatpush1.msra.mxu0 0.0
  %1798 = vmatprep.subr.mxu0 0.0
  %1799 = vmatpush1.msra.mxu0 0.0
  %1800 = vmatprep.subr.mxu0 0.0
  %1801 = vmatpush1.msra.mxu0 0.0
  %1802 = vmatprep.subr.mxu0 0.0
  %1803 = vmatpush1.msra.mxu0 0.0
  %1804 = vmatprep.subr.mxu0 0.0
  %1805 = vmatpush1.msra.mxu0 0.0
  %1806 = vmatprep.subr.mxu0 0.0
  %1807 = vmatpush1.msra.mxu0 0.0
  %1808 = vmatprep.subr.mxu0 0.0
  %1809 = vmatpush1.msra.mxu0 0.0
  %1810 = vmatprep.subr.mxu0 0.0
  %1811 = vmatpush1.msra.mxu0 0.0
  %1812 = vmatprep.subr.mxu0 0.0
  %1813 = vmatpush1.msra.mxu0 0.0
  %1814 = vmatprep.subr.mxu0 0.0
  %1815 = vmatpush1.msra.mxu0 0.0
  %1816 = vmatprep.subr.mxu0 0.0
  %1817 = vmatpush1.msra.mxu0 0.0
  %1818 = vmatprep.subr.mxu0 0.0
  %1819 = vmatpush1.msra.mxu0 0.0
  %1820 = vmatprep.subr.mxu0 0.0
  %1821 = vmatpush1.msra.mxu0 0.0
  %1822 = vmatprep.subr.mxu0 0.0
  %1823 = vmatpush1.msra.mxu0 0.0
  %1824 = vmatprep.subr.mxu0 0.0
  %1825 = vmatpush1.msra.mxu0 0.0
  %1826 = vmatprep.subr.mxu0 0.0
  %1827 = vmatpush1.msra.mxu0 0.0
  %1828 = vmatprep.subr.mxu0 0.0
  %1829 = vmatpush1.msra.mxu0 0.0
  %1830 = vmatprep.subr.mxu0 0.0
  %1831 = vmatpush1.msra.mxu0 0.0
  %1832 = vmatprep.subr.mxu0 0.0
  %1833 = vmatpush1.msra.mxu0 0.0
  %1834 = vmatprep.subr.mxu0 0.0
  %1835 = vmatpush1.msra.mxu0 0.0
  %1836 = vmatprep.mubr.f32.mxu0 0.0
  %1837 = vmatmul.mubr.f32.gmra.mrb[0].mxu0 %v1764
  %v1838 = vpop.f32.mrb[0].mxu0
  %v1839 = vadd.f32 0.0, %v1838
  %v1840 = vpop.f32.mrb[0].mxu0
  %1841 = vmatprep.mubr.f32.mxu0 0.0
  %1842 = vmatmul.mubr.f32.gmra.mrb[0].mxu0 %v1767
  %v1843 = vpop.f32.mrb[0].mxu0
  %v1844 = vadd.f32 0.0, %v1843
  %v1845 = vpop.f32.mrb[0].mxu0
  %1846 = vdwg.mxu0
  %v1847 = vadd.f32 %v1758, %v1839
  %v1848 = vadd.f32 %v1759, %v1844
  %v1849 = vld [vmem:[%s4] sm:$0xff]
  %v1850 = vld [vmem:[%s4 + $0x8] sm:$0xff]
  %v1851 = vld [vmem:[%s4 + $0x10] sm:$0xff]
  %v1852 = vld [vmem:[%s4 + $0x18] sm:$0xff]
  %v1853 = vld [vmem:[%s4 + $0x20] sm:$0xff]
  %v1854 = vld [vmem:[%s4 + $0x28] sm:$0xff]
  %v1855 = vld [vmem:[%s4 + $0x30] sm:$0xff]
  %v1856 = vld [vmem:[%s4 + $0x38] sm:$0xff]
  %v1857 = vld [vmem:[%s4 + $0x40] sm:$0xff]
  %v1858 = vld [vmem:[%s4 + $0x48] sm:$0xff]
  %v1859 = vld [vmem:[%s4 + $0x50] sm:$0xff]
  %v1860 = vld [vmem:[%s4 + $0x58] sm:$0xff]
  %v1861 = vld [vmem:[%s4 + $0x60] sm:$0xff]
  %v1862 = vld [vmem:[%s4 + $0x68] sm:$0xff]
  %v1863 = vld [vmem:[%s4 + $0x70] sm:$0xff]
  %v1864 = vld [vmem:[%s4 + $0x78] sm:$0xff]
  %v1865 = vld [vmem:[%s4 + $0x80] sm:$0xff]
  %v1866 = vld [vmem:[%s4 + $0x88] sm:$0xff]
  %v1867 = vld [vmem:[%s4 + $0x90] sm:$0xff]
  %v1868 = vld [vmem:[%s4 + $0x98] sm:$0xff]
  %v1869 = vmul.f32 %v1849, %v1847
  %v1870 = vmul.f32 %v1850, %v1848
  %v1871 = vmul.f32 %v1851, %v1847
  %v1872 = vmul.f32 %v1852, %v1848
  %v1873 = vmul.f32 %v1853, %v1847
  %v1874 = vmul.f32 %v1854, %v1848
  %v1875 = vmul.f32 %v1855, %v1847
  %v1876 = vmul.f32 %v1856, %v1848
  %v1877 = vmul.f32 %v1857, %v1847
  %v1878 = vmul.f32 %v1858, %v1848
  %v1879 = vmul.f32 %v1859, %v1847
  %v1880 = vmul.f32 %v1860, %v1848
  %v1881 = vmul.f32 %v1861, %v1847
  %v1882 = vmul.f32 %v1862, %v1848
  %v1883 = vmul.f32 %v1863, %v1847
  %v1884 = vmul.f32 %v1864, %v1848
  %v1885 = vmul.f32 %v1865, %v1847
  %v1886 = vmul.f32 %v1866, %v1848
  %v1887 = vmul.f32 %v1867, %v1847
  %v1888 = vmul.f32 %v1868, %v1848
  %vm1889 = vcmask 523264
  %v1890 = vsel %vm1889, %v1869, 0.0
  %1891 = vadd.xlane.f32.xlu0 %v1890
  %v1892 = vpop.xlane.xlu0 %1891
  %v1893 = vsel %vm1889, %v1870, 0.0
  %1894 = vadd.xlane.f32.xlu0 %v1893
  %v1895 = vpop.xlane.xlu0 %1894
  %v1896 = vsel %vm1889, %v1871, 0.0
  %1897 = vadd.xlane.f32.xlu0 %v1896
  %v1898 = vpop.xlane.xlu0 %1897
  %v1899 = vsel %vm1889, %v1872, 0.0
  %1900 = vadd.xlane.f32.xlu0 %v1899
  %v1901 = vpop.xlane.xlu0 %1900
  %v1902 = vsel %vm1889, %v1873, 0.0
  %1903 = vadd.xlane.f32.xlu0 %v1902
  %v1904 = vpop.xlane.xlu0 %1903
  %v1905 = vsel %vm1889, %v1874, 0.0
  %1906 = vadd.xlane.f32.xlu0 %v1905
  %v1907 = vpop.xlane.xlu0 %1906
  %v1908 = vsel %vm1889, %v1875, 0.0
  %1909 = vadd.xlane.f32.xlu0 %v1908
  %v1910 = vpop.xlane.xlu0 %1909
  %v1911 = vsel %vm1889, %v1876, 0.0
  %1912 = vadd.xlane.f32.xlu0 %v1911
  %v1913 = vpop.xlane.xlu0 %1912
  %v1914 = vsel %vm1889, %v1877, 0.0
  %1915 = vadd.xlane.f32.xlu0 %v1914
  %v1916 = vpop.xlane.xlu0 %1915
  %v1917 = vsel %vm1889, %v1878, 0.0
  %1918 = vadd.xlane.f32.xlu0 %v1917
  %v1919 = vpop.xlane.xlu0 %1918
  %v1920 = vsel %vm1889, %v1879, 0.0
  %1921 = vadd.xlane.f32.xlu0 %v1920
  %v1922 = vpop.xlane.xlu0 %1921
  %v1923 = vsel %vm1889, %v1880, 0.0
  %1924 = vadd.xlane.f32.xlu0 %v1923
  %v1925 = vpop.xlane.xlu0 %1924
  %v1926 = vsel %vm1889, %v1881, 0.0
  %1927 = vadd.xlane.f32.xlu0 %v1926
  %v1928 = vpop.xlane.xlu0 %1927
  %v1929 = vsel %vm1889, %v1882, 0.0
  %1930 = vadd.xlane.f32.xlu0 %v1929
  %v1931 = vpop.xlane.xlu0 %1930
  %v1932 = vsel %vm1889, %v1883, 0.0
  %1933 = vadd.xlane.f32.xlu0 %v1932
  %v1934 = vpop.xlane.xlu0 %1933
  %v1935 = vsel %vm1889, %v1884, 0.0
  %1936 = vadd.xlane.f32.xlu0 %v1935
  %v1937 = vpop.xlane.xlu0 %1936
  %v1938 = vsel %vm1889, %v1885, 0.0
  %1939 = vadd.xlane.f32.xlu0 %v1938
  %v1940 = vpop.xlane.xlu0 %1939
  %v1941 = vsel %vm1889, %v1886, 0.0
  %1942 = vadd.xlane.f32.xlu0 %v1941
  %v1943 = vpop.xlane.xlu0 %1942
  %v1944 = vsel %vm1889, %v1887, 0.0
  %1945 = vadd.xlane.f32.xlu0 %v1944
  %v1946 = vpop.xlane.xlu0 %1945
  %v1947 = vsel %vm1889, %v1888, 0.0
  %1948 = vadd.xlane.f32.xlu0 %v1947
  %v1949 = vpop.xlane.xlu0 %1948
  %v1970 = vlaneseq
  %v1971 = vand.u32 %v1970, 127
  %v1972 = vlaneseq
  %v1973 = vshrl.u32 %v1972, 7
  %v1974 = vsub.s32 %v1971, %v1973
  %v1975 = vrot.slane %v1892, %v1974
  %v1976 = vadd.s32 %v1971, 4294967288
  %v1977 = vlaneseq
  %v1978 = vshrl.u32 %v1977, 7
  %v1979 = vsub.s32 %v1976, %v1978
  %v1980 = vrot.slane %v1895, %v1979
  %vm1981 = vcmask 130112
  %v1982 = vsel %vm1981, %v1980, %v1975
  %v1983 = vlaneseq
  %v1984 = vshrl.u32 %v1983, 7
  %v1985 = vsub.s32 %v1971, %v1984
  %v1986 = vrot.slane %v1898, %v1985
  %v1987 = vlaneseq
  %v1988 = vshrl.u32 %v1987, 7
  %v1989 = vsub.s32 %v1976, %v1988
  %v1990 = vrot.slane %v1901, %v1989
  %v1991 = vsel %vm1981, %v1990, %v1986
  %v1992 = vlaneseq
  %v1993 = vshrl.u32 %v1992, 7
  %v1994 = vsub.s32 %v1971, %v1993
  %v1995 = vrot.slane %v1904, %v1994
  %v1996 = vlaneseq
  %v1997 = vshrl.u32 %v1996, 7
  %v1998 = vsub.s32 %v1976, %v1997
  %v1999 = vrot.slane %v1907, %v1998
  %v2000 = vsel %vm1981, %v1999, %v1995
  %v2001 = vlaneseq
  %v2002 = vshrl.u32 %v2001, 7
  %v2003 = vsub.s32 %v1971, %v2002
  %v2004 = vrot.slane %v1910, %v2003
  %v2005 = vlaneseq
  %v2006 = vshrl.u32 %v2005, 7
  %v2007 = vsub.s32 %v1976, %v2006
  %v2008 = vrot.slane %v1913, %v2007
  %v2009 = vsel %vm1981, %v2008, %v2004
  %v2010 = vlaneseq
  %v2011 = vshrl.u32 %v2010, 7
  %v2012 = vsub.s32 %v1971, %v2011
  %v2013 = vrot.slane %v1916, %v2012
  %v2014 = vlaneseq
  %v2015 = vshrl.u32 %v2014, 7
  %v2016 = vsub.s32 %v1976, %v2015
  %v2017 = vrot.slane %v1919, %v2016
  %v2018 = vsel %vm1981, %v2017, %v2013
  %v2019 = vlaneseq
  %v2020 = vshrl.u32 %v2019, 7
  %v2021 = vsub.s32 %v1971, %v2020
  %v2022 = vrot.slane %v1922, %v2021
  %v2023 = vlaneseq
  %v2024 = vshrl.u32 %v2023, 7
  %v2025 = vsub.s32 %v1976, %v2024
  %v2026 = vrot.slane %v1925, %v2025
  %v2027 = vsel %vm1981, %v2026, %v2022
  %v2028 = vlaneseq
  %v2029 = vshrl.u32 %v2028, 7
  %v2030 = vsub.s32 %v1971, %v2029
  %v2031 = vrot.slane %v1928, %v2030
  %v2032 = vlaneseq
  %v2033 = vshrl.u32 %v2032, 7
  %v2034 = vsub.s32 %v1976, %v2033
  %v2035 = vrot.slane %v1931, %v2034
  %v2036 = vsel %vm1981, %v2035, %v2031
  %v2037 = vlaneseq
  %v2038 = vshrl.u32 %v2037, 7
  %v2039 = vsub.s32 %v1971, %v2038
  %v2040 = vrot.slane %v1934, %v2039
  %v2041 = vlaneseq
  %v2042 = vshrl.u32 %v2041, 7
  %v2043 = vsub.s32 %v1976, %v2042
  %v2044 = vrot.slane %v1937, %v2043
  %v2045 = vsel %vm1981, %v2044, %v2040
  %v2046 = vlaneseq
  %v2047 = vshrl.u32 %v2046, 7
  %v2048 = vsub.s32 %v1971, %v2047
  %v2049 = vrot.slane %v1940, %v2048
  %v2050 = vlaneseq
  %v2051 = vshrl.u32 %v2050, 7
  %v2052 = vsub.s32 %v1976, %v2051
  %v2053 = vrot.slane %v1943, %v2052
  %v2054 = vsel %vm1981, %v2053, %v2049
  %v2055 = vlaneseq
  %v2056 = vshrl.u32 %v2055, 7
  %v2057 = vsub.s32 %v1971, %v2056
  %v2058 = vrot.slane %v1946, %v2057
  %v2059 = vlaneseq
  %v2060 = vshrl.u32 %v2059, 7
  %v2061 = vsub.s32 %v1976, %v2060
  %v2062 = vrot.slane %v1949, %v2061
  %v2063 = vsel %vm1981, %v2062, %v2058
  %vm2064 = vcmask 1041409
  %v2065 = vsel %vm2064, %v1991, %v1982
  %vm2066 = vcmask 1042434
  %v2067 = vsel %vm2066, %v2000, %v2065
  %vm2068 = vcmask 1043459
  %v2069 = vsel %vm2068, %v2009, %v2067
  %vm2070 = vcmask 1044484
  %v2071 = vsel %vm2070, %v2018, %v2069
  %vm2072 = vcmask 1045509
  %v2073 = vsel %vm2072, %v2027, %v2071
  %vm2074 = vcmask 1046534
  %v2075 = vsel %vm2074, %v2036, %v2073
  %vm2076 = vcmask 1047559
  %v2077 = vsel %vm2076, %v2045, %v2075
  %v2078 = vsel %vm2064, %v2063, %v2054
  %vm2081 = vcmask 130048
  %v2082 = vsel %vm2081, %v2077, 0.0
  %2083 = vadd.xlane.f32.xlu0 %v2082
  %v2084 = vpop.xlane.xlu0 %2083
  %vm2085 = vcmask 123904
  %v2086 = vsel %vm2085, %v2078, 0.0
  %2087 = vadd.xlane.f32.xlu0 %v2086
  %v2088 = vpop.xlane.xlu0 %2087
  %v2089 = vld [vmem:[%s5] sm:$0xff]
  %v2090 = vld [vmem:[%s5 + $0x8] sm:$0x3]
  %v2091 = vadd.f32 %v2084, %v2089
  %v2092 = vadd.f32 %v2088, %v2090
  %2095 = vrot.lane.b32.xlu0 %v1847, 64
  %v2096 = vpop.permute.xlu0 %2095
  %2097 = vrot.lane.b32.xlu0 %v1848, 64
  %v2098 = vpop.permute.xlu0 %2097
  %v2101 = vmul.f32 %v1849, %v2096
  %v2102 = vmul.f32 %v1850, %v2098
  %v2103 = vmul.f32 %v1851, %v2096
  %v2104 = vmul.f32 %v1852, %v2098
  %v2105 = vmul.f32 %v1853, %v2096
  %v2106 = vmul.f32 %v1854, %v2098
  %v2107 = vmul.f32 %v1855, %v2096
  %v2108 = vmul.f32 %v1856, %v2098
  %v2109 = vmul.f32 %v1857, %v2096
  %v2110 = vmul.f32 %v1858, %v2098
  %v2111 = vmul.f32 %v1859, %v2096
  %v2112 = vmul.f32 %v1860, %v2098
  %v2113 = vmul.f32 %v1861, %v2096
  %v2114 = vmul.f32 %v1862, %v2098
  %v2115 = vmul.f32 %v1863, %v2096
  %v2116 = vmul.f32 %v1864, %v2098
  %v2117 = vmul.f32 %v1865, %v2096
  %v2118 = vmul.f32 %v1866, %v2098
  %v2119 = vmul.f32 %v1867, %v2096
  %v2120 = vmul.f32 %v1868, %v2098
  %v2121 = vsel %vm1889, %v2101, 0.0
  %2122 = vadd.xlane.f32.xlu0 %v2121
  %v2123 = vpop.xlane.xlu0 %2122
  %v2124 = vsel %vm1889, %v2102, 0.0
  %2125 = vadd.xlane.f32.xlu0 %v2124
  %v2126 = vpop.xlane.xlu0 %2125
  %v2127 = vsel %vm1889, %v2103, 0.0
  %2128 = vadd.xlane.f32.xlu0 %v2127
  %v2129 = vpop.xlane.xlu0 %2128
  %v2130 = vsel %vm1889, %v2104, 0.0
  %2131 = vadd.xlane.f32.xlu0 %v2130
  %v2132 = vpop.xlane.xlu0 %2131
  %v2133 = vsel %vm1889, %v2105, 0.0
  %2134 = vadd.xlane.f32.xlu0 %v2133
  %v2135 = vpop.xlane.xlu0 %2134
  %v2136 = vsel %vm1889, %v2106, 0.0
  %2137 = vadd.xlane.f32.xlu0 %v2136
  %v2138 = vpop.xlane.xlu0 %2137
  %v2139 = vsel %vm1889, %v2107, 0.0
  %2140 = vadd.xlane.f32.xlu0 %v2139
  %v2141 = vpop.xlane.xlu0 %2140
  %v2142 = vsel %vm1889, %v2108, 0.0
  %2143 = vadd.xlane.f32.xlu0 %v2142
  %v2144 = vpop.xlane.xlu0 %2143
  %v2145 = vsel %vm1889, %v2109, 0.0
  %2146 = vadd.xlane.f32.xlu0 %v2145
  %v2147 = vpop.xlane.xlu0 %2146
  %v2148 = vsel %vm1889, %v2110, 0.0
  %2149 = vadd.xlane.f32.xlu0 %v2148
  %v2150 = vpop.xlane.xlu0 %2149
  %v2151 = vsel %vm1889, %v2111, 0.0
  %2152 = vadd.xlane.f32.xlu0 %v2151
  %v2153 = vpop.xlane.xlu0 %2152
  %v2154 = vsel %vm1889, %v2112, 0.0
  %2155 = vadd.xlane.f32.xlu0 %v2154
  %v2156 = vpop.xlane.xlu0 %2155
  %v2157 = vsel %vm1889, %v2113, 0.0
  %2158 = vadd.xlane.f32.xlu0 %v2157
  %v2159 = vpop.xlane.xlu0 %2158
  %v2160 = vsel %vm1889, %v2114, 0.0
  %2161 = vadd.xlane.f32.xlu0 %v2160
  %v2162 = vpop.xlane.xlu0 %2161
  %v2163 = vsel %vm1889, %v2115, 0.0
  %2164 = vadd.xlane.f32.xlu0 %v2163
  %v2165 = vpop.xlane.xlu0 %2164
  %v2166 = vsel %vm1889, %v2116, 0.0
  %2167 = vadd.xlane.f32.xlu0 %v2166
  %v2168 = vpop.xlane.xlu0 %2167
  %v2169 = vsel %vm1889, %v2117, 0.0
  %2170 = vadd.xlane.f32.xlu0 %v2169
  %v2171 = vpop.xlane.xlu0 %2170
  %v2172 = vsel %vm1889, %v2118, 0.0
  %2173 = vadd.xlane.f32.xlu0 %v2172
  %v2174 = vpop.xlane.xlu0 %2173
  %v2175 = vsel %vm1889, %v2119, 0.0
  %2176 = vadd.xlane.f32.xlu0 %v2175
  %v2177 = vpop.xlane.xlu0 %2176
  %v2178 = vsel %vm1889, %v2120, 0.0
  %2179 = vadd.xlane.f32.xlu0 %v2178
  %v2180 = vpop.xlane.xlu0 %2179
  %v2201 = vlaneseq
  %v2202 = vshrl.u32 %v2201, 7
  %v2203 = vsub.s32 %v1971, %v2202
  %v2204 = vrot.slane %v2123, %v2203
  %v2205 = vlaneseq
  %v2206 = vshrl.u32 %v2205, 7
  %v2207 = vsub.s32 %v1976, %v2206
  %v2208 = vrot.slane %v2126, %v2207
  %v2209 = vsel %vm1981, %v2208, %v2204
  %v2210 = vlaneseq
  %v2211 = vshrl.u32 %v2210, 7
  %v2212 = vsub.s32 %v1971, %v2211
  %v2213 = vrot.slane %v2129, %v2212
  %v2214 = vlaneseq
  %v2215 = vshrl.u32 %v2214, 7
  %v2216 = vsub.s32 %v1976, %v2215
  %v2217 = vrot.slane %v2132, %v2216
  %v2218 = vsel %vm1981, %v2217, %v2213
  %v2219 = vlaneseq
  %v2220 = vshrl.u32 %v2219, 7
  %v2221 = vsub.s32 %v1971, %v2220
  %v2222 = vrot.slane %v2135, %v2221
  %v2223 = vlaneseq
  %v2224 = vshrl.u32 %v2223, 7
  %v2225 = vsub.s32 %v1976, %v2224
  %v2226 = vrot.slane %v2138, %v2225
  %v2227 = vsel %vm1981, %v2226, %v2222
  %v2228 = vlaneseq
  %v2229 = vshrl.u32 %v2228, 7
  %v2230 = vsub.s32 %v1971, %v2229
  %v2231 = vrot.slane %v2141, %v2230
  %v2232 = vlaneseq
  %v2233 = vshrl.u32 %v2232, 7
  %v2234 = vsub.s32 %v1976, %v2233
  %v2235 = vrot.slane %v2144, %v2234
  %v2236 = vsel %vm1981, %v2235, %v2231
  %v2237 = vlaneseq
  %v2238 = vshrl.u32 %v2237, 7
  %v2239 = vsub.s32 %v1971, %v2238
  %v2240 = vrot.slane %v2147, %v2239
  %v2241 = vlaneseq
  %v2242 = vshrl.u32 %v2241, 7
  %v2243 = vsub.s32 %v1976, %v2242
  %v2244 = vrot.slane %v2150, %v2243
  %v2245 = vsel %vm1981, %v2244, %v2240
  %v2246 = vlaneseq
  %v2247 = vshrl.u32 %v2246, 7
  %v2248 = vsub.s32 %v1971, %v2247
  %v2249 = vrot.slane %v2153, %v2248
  %v2250 = vlaneseq
  %v2251 = vshrl.u32 %v2250, 7
  %v2252 = vsub.s32 %v1976, %v2251
  %v2253 = vrot.slane %v2156, %v2252
  %v2254 = vsel %vm1981, %v2253, %v2249
  %v2255 = vlaneseq
  %v2256 = vshrl.u32 %v2255, 7
  %v2257 = vsub.s32 %v1971, %v2256
  %v2258 = vrot.slane %v2159, %v2257
  %v2259 = vlaneseq
  %v2260 = vshrl.u32 %v2259, 7
  %v2261 = vsub.s32 %v1976, %v2260
  %v2262 = vrot.slane %v2162, %v2261
  %v2263 = vsel %vm1981, %v2262, %v2258
  %v2264 = vlaneseq
  %v2265 = vshrl.u32 %v2264, 7
  %v2266 = vsub.s32 %v1971, %v2265
  %v2267 = vrot.slane %v2165, %v2266
  %v2268 = vlaneseq
  %v2269 = vshrl.u32 %v2268, 7
  %v2270 = vsub.s32 %v1976, %v2269
  %v2271 = vrot.slane %v2168, %v2270
  %v2272 = vsel %vm1981, %v2271, %v2267
  %v2273 = vlaneseq
  %v2274 = vshrl.u32 %v2273, 7
  %v2275 = vsub.s32 %v1971, %v2274
  %v2276 = vrot.slane %v2171, %v2275
  %v2277 = vlaneseq
  %v2278 = vshrl.u32 %v2277, 7
  %v2279 = vsub.s32 %v1976, %v2278
  %v2280 = vrot.slane %v2174, %v2279
  %v2281 = vsel %vm1981, %v2280, %v2276
  %v2282 = vlaneseq
  %v2283 = vshrl.u32 %v2282, 7
  %v2284 = vsub.s32 %v1971, %v2283
  %v2285 = vrot.slane %v2177, %v2284
  %v2286 = vlaneseq
  %v2287 = vshrl.u32 %v2286, 7
  %v2288 = vsub.s32 %v1976, %v2287
  %v2289 = vrot.slane %v2180, %v2288
  %v2290 = vsel %vm1981, %v2289, %v2285
  %v2291 = vsel %vm2064, %v2218, %v2209
  %v2292 = vsel %vm2066, %v2227, %v2291
  %v2293 = vsel %vm2068, %v2236, %v2292
  %v2294 = vsel %vm2070, %v2245, %v2293
  %v2295 = vsel %vm2072, %v2254, %v2294
  %v2296 = vsel %vm2074, %v2263, %v2295
  %v2297 = vsel %vm2076, %v2272, %v2296
  %v2298 = vsel %vm2064, %v2290, %v2281
  %v2301 = vsel %vm2081, %v2297, 0.0
  %2302 = vadd.xlane.f32.xlu0 %v2301
  %v2303 = vpop.xlane.xlu0 %2302
  %v2304 = vsel %vm2085, %v2298, 0.0
  %2305 = vadd.xlane.f32.xlu0 %v2304
  %v2306 = vpop.xlane.xlu0 %2305
  %v2307 = vadd.f32 %v2303, %v2089
  %v2308 = vadd.f32 %v2306, %v2090
  %2311 = vrot.lane.b32.xlu0 %v2307, 1
  %v2312 = vpop.permute.xlu0 %2311
  %2313 = vrot.lane.b32.xlu0 %v2308, 1
  %v2314 = vpop.permute.xlu0 %2313
  %vm2317 = vcmask 7168
  %v2318 = vsel %vm2317, %v2091, %v2312
  %v2319 = vsel %vm2317, %v2092, %v2314
  %vm2320 = vcmask 15360
  %2321 = vst.msk [vmem:[%s6] sm:$0xff] %vm2320, %v2318
  %vm2322 = vcmask 9216
  %2323 = vst.msk [vmem:[%s6 + $0x8] sm:$0x3] %vm2322, %v2319
  // Predicated region
  $region26: #{cnn_fcgr_forward.1} parent=0 // pred_check
    _
  $region27: #{cnn_fcgr_forward.1} parent=0 // pred_check_branch
    %2325 = sbr.rel (0) target = $region29
  $region28: #{cnn_fcgr_forward.1} parent=0 // pred_region
    _
  $region29: #{cnn_fcgr_forward.1} parent=0 // pred_fallthru
    _
  // Predicated region
  $region30: #{cnn_fcgr_forward.1} parent=0 // pred_check
    _
  $region31: #{cnn_fcgr_forward.1} parent=0 // pred_check_branch
    %2327 = sbr.rel (0) target = $region33
  $region32: #{cnn_fcgr_forward.1} parent=0 // pred_region
    _
  $region33: #{cnn_fcgr_forward.1} parent=0 // pred_fallthru
    _

</llo_original>
